<compile_context>
chip_gen: v5e
topology: v5e:2x2
jax: 0.10.0
libtpu: 0.0.40
codegen_flags: <defaults>
</compile_context>

<pallas_src>
import jax
import jax.numpy as jnp
from jax.experimental import pallas as pl
from jax.experimental.pallas import tpu as pltpu

LANE = 128
SUB = 8


def _round_up(x, m):
    return (x + m - 1) // m * m


# ---------------------------------------------------------------------------
# Fused kernel
#   idx_ref      [Np]        int32  SMEM (scalar prefetch)
#   feat_ref     [Mc, Fp]    bf16   VMEM (full, constant block)
#   wcat_ref     [Fp, 2*Hp]  bf16   VMEM ([W_self | W_agg])
#   bias_ref     [1, Hp]     f32    VMEM
#   graph_hbm    [n, Mc]     f32    HBM  (pl.ANY; rows gathered manually)
#   out_ref      [TN, Hp]    f32
#   scratch: fw_self [Mc,Hp] f32, fw_agg [Mc,Hp] f32, grows [TN,Mc] f32, one DMA sem
# ---------------------------------------------------------------------------
def fused_aggregator_kernel(idx_ref, feat_ref, wcat_ref, bias_ref, graph_hbm,
                            out_ref, fw_self_ref, fw_agg_ref, grows_ref, sem):
    i = pl.program_id(0)
    tn = out_ref.shape[0]
    hp = out_ref.shape[1]
    base = i * tn

    # 1) Kick off the DMA gather of this tile's adjacency rows (f32, only rows we need).
    def row_copy(r):
        return pltpu.make_async_copy(graph_hbm.at[pl.ds(idx_ref[base + r], 1)],
                                     grows_ref.at[pl.ds(r, 1)], sem)

    for r in range(tn):          # tn is small & static -> fully unrolled
        row_copy(r).start()

    # 2) Per-node projections, computed once (scratch persists across the sequential grid):
    #    fw = feat @ [W_self | W_agg], bf16 operands, f32 accumulation, 2*Hp-wide MXU dot.
    @pl.when(i == 0)
    def _():
        fw = jnp.dot(feat_ref[...], wcat_ref[...], preferred_element_type=jnp.float32)
        fw_self_ref[...] = fw[:, :hp]
        fw_agg_ref[...] = fw[:, hp:]

    # 3) Self term = row gather of feat @ W_self (gather commutes with the right-matmul).
    #    Stage the gathered rows in out_ref while the adjacency-row DMAs are still in flight.
    for r in range(tn):
        out_ref[pl.ds(r, 1), :] = fw_self_ref[pl.ds(idx_ref[base + r], 1), :]

    for r in range(tn):
        row_copy(r).wait()

    # 4) agg = graph[idx] @ (feat @ W_agg); gathered adjacency rows stay f32 for accuracy.
    agg = jnp.dot(grows_ref[...], fw_agg_ref[...], preferred_element_type=jnp.float32)

    z = out_ref[...] + agg + bias_ref[...]
    out_ref[...] = jnp.where(z > 0, z, 0.01 * z)   # leaky_relu, f32 epilogue


# ---------------------------------------------------------------------------
# Wrapper
# ---------------------------------------------------------------------------
def aggregator_forward(node_x, graph_n_n, features_n_f, weight, bias, *, time_steps, hidden):
    """node_x: [B, T+1] int32; graph_n_n: [n, n] f32 (dense adjacency); features_n_f: [n, F] f32;
    weight: [2F, H] f32 (transposed vs torch Linear); bias: [H] f32. Returns [B, T+1, H] f32."""
    n_nodes, feat_dim = features_n_f.shape
    B = node_x.shape[0]
    idx = node_x.reshape(-1).astype(jnp.int32)
    N = idx.shape[0]

    # Lane dims (F, H) -> multiples of 128; contraction/node dim only needs sublane (8) rounding.
    Fp = _round_up(feat_dim, LANE)
    Hp = _round_up(hidden, LANE)
    Mc = _round_up(n_nodes, SUB)
    Np0 = _round_up(N, SUB)
    TN = min(Np0, 64)                 # per-step output rows (bounds static unrolling)
    Np = _round_up(Np0, TN)

    feat_p = jnp.zeros((Mc, Fp), jnp.bfloat16).at[:n_nodes, :feat_dim].set(
        features_n_f.astype(jnp.bfloat16))
    wcat = jnp.zeros((Fp, 2 * Hp), jnp.bfloat16)
    wcat = wcat.at[:feat_dim, :hidden].set(weight[:feat_dim].astype(jnp.bfloat16))        # W_self
    wcat = wcat.at[:feat_dim, Hp:Hp + hidden].set(weight[feat_dim:].astype(jnp.bfloat16)) # W_agg
    bias_p = jnp.zeros((1, Hp), jnp.float32).at[0, :hidden].set(bias)
    idx_p = jnp.zeros((Np,), jnp.int32).at[:N].set(idx)

    # Adjacency stays f32 and untouched in HBM unless its column count needs sublane rounding.
    if Mc != n_nodes:
        graph_in = jnp.zeros((n_nodes, Mc), jnp.float32).at[:, :n_nodes].set(graph_n_n)
    else:
        graph_in = graph_n_n.astype(jnp.float32)

    out_p = pl.pallas_call(
        fused_aggregator_kernel,
        out_shape=jax.ShapeDtypeStruct((Np, Hp), jnp.float32),
        grid_spec=pltpu.PrefetchScalarGridSpec(
            num_scalar_prefetch=1,
            grid=(Np // TN,),
            in_specs=[
                pl.BlockSpec((Mc, Fp), lambda i, idx_ref: (0, 0)),       # feat (resident)
                pl.BlockSpec((Fp, 2 * Hp), lambda i, idx_ref: (0, 0)),   # [W_self | W_agg]
                pl.BlockSpec((1, Hp), lambda i, idx_ref: (0, 0)),        # bias
                pl.BlockSpec(memory_space=pl.ANY),                       # graph: raw HBM ref
            ],
            out_specs=pl.BlockSpec((TN, Hp), lambda i, idx_ref: (i, 0)),
            scratch_shapes=[
                pltpu.VMEM((Mc, Hp), jnp.float32),   # fw_self = feat @ W_self
                pltpu.VMEM((Mc, Hp), jnp.float32),   # fw_agg  = feat @ W_agg
                pltpu.VMEM((TN, Mc), jnp.float32),   # gathered adjacency rows
                pltpu.SemaphoreType.DMA(()),
            ],
        ),
        compiler_params=pltpu.CompilerParams(
            # Sequential axis: fw_* scratch is filled once at i == 0 and reused.
            dimension_semantics=("arbitrary",),
        ),
    )(idx_p, feat_p, wcat, bias_p, graph_in)

    return out_p[:N, :hidden].reshape(B, time_steps + 1, hidden)


def reference_forward(node_x, graph_n_n, features_n_f, weight, bias, *, time_steps, hidden):
    idx = node_x.reshape(-1)
    adj_rows = graph_n_n[idx, :]
    x_self = features_n_f[idx, :]
    agg = adj_rows @ features_n_f
    z = jnp.concatenate([x_self, agg], axis=1) @ weight + bias
    z = jnp.where(z > 0, z, 0.01 * z)
    return z.reshape(node_x.shape[0], time_steps + 1, hidden)


if __name__ == "__main__":
    # args: feature_dim=32, hidden=32, time=5
    feature_dim = 32
    hidden = 32
    time_steps = 5
    batch = 4
    n_nodes = 384  # N = 24 requested rows << n_nodes -> row-gather path

    key = jax.random.PRNGKey(0)
    k1, k2, k3, k4, k5 = jax.random.split(key, 5)

    node_x = jax.random.randint(k1, (batch, time_steps + 1), 0, n_nodes, dtype=jnp.int32)

    dense = jax.random.uniform(k2, (n_nodes, n_nodes), dtype=jnp.float32)
    mask = (jax.random.uniform(k3, (n_nodes, n_nodes)) < 0.1).astype(jnp.float32)
    graph_n_n = dense * mask  # sparse weighted adjacency represented densely

    features_n_f = jax.random.normal(k4, (n_nodes, feature_dim), dtype=jnp.float32)

    # Deterministic params mirroring torch: xavier_uniform weight, uniform bias.
    fan_in, fan_out = 2 * feature_dim, hidden
    bound_w = (6.0 / (fan_in + fan_out)) ** 0.5
    kw, kb = jax.random.split(k5)
    weight = jax.random.uniform(kw, (2 * feature_dim, hidden), minval=-bound_w,
                                maxval=bound_w, dtype=jnp.float32)
    bound_b = 1.0 / (fan_in ** 0.5)
    bias = jax.random.uniform(kb, (hidden,), minval=-bound_b, maxval=bound_b,
                              dtype=jnp.float32)

    out = aggregator_forward(node_x, graph_n_n, features_n_f, weight, bias,
                             time_steps=time_steps, hidden=hidden)
    out = jax.block_until_ready(out)

    ref = reference_forward(node_x, graph_n_n, features_n_f, weight, bias,
                            time_steps=time_steps, hidden=hidden)
    assert out.shape == (batch, time_steps + 1, hidden)
    # feat/weights are bf16 MXU operands (f32 accumulation, f32 adjacency) vs pure-f32 reference.
    assert jnp.allclose(out, ref, atol=1e-1, rtol=5e-2), float(jnp.max(jnp.abs(out - ref)))

    print("KERNEL_OK")
</pallas_src>

<mosaic_0001>
module attributes {stable_mosaic.version = 11 : i64} {
  func.func @fused_aggregator_kernel(%arg0: i32, %arg1: memref<24xi32, #tpu.memory_space<smem>>, %arg2: memref<384x128xbf16, #tpu.memory_space<vmem>>, %arg3: memref<128x256xbf16, #tpu.memory_space<vmem>>, %arg4: memref<1x128xf32, #tpu.memory_space<vmem>>, %arg5: memref<384x384xf32, #tpu.memory_space<any>>, %arg6: memref<24x128xf32, #tpu.memory_space<vmem>>, %arg7: memref<384x128xf32, #tpu.memory_space<vmem>>, %arg8: memref<384x128xf32, #tpu.memory_space<vmem>>, %arg9: memref<24x384xf32, #tpu.memory_space<vmem>>, %arg10: memref<!tpu.dma_semaphore, #tpu.memory_space<semaphore_mem>>) attributes {dimension_semantics = [#tpu.dimension_semantics<arbitrary>], iteration_bounds = array<i64: 1>, scalar_prefetch = 1 : i64, scratch_operands = 4 : i64, tpu.core_type = #tpu.core_type<tc>, window_params = [{pipeline_mode = #tpu.pipeline_mode<synchronous>, transform_indices = @transform_0, window_bounds = array<i64: 384, 128>}, {pipeline_mode = #tpu.pipeline_mode<synchronous>, transform_indices = @transform_1, window_bounds = array<i64: 128, 256>}, {pipeline_mode = #tpu.pipeline_mode<synchronous>, transform_indices = @transform_2, window_bounds = array<i64: 1, 128>}, {}, {transform_indices = @transform_4, window_bounds = array<i64: 24, 128>}]} {
    %c24_i32 = arith.constant 24 : i32
    %0 = arith.muli %arg0, %c24_i32 : i32
    %c0_i32 = arith.constant 0 : i32
    %1 = arith.addi %0, %c0_i32 : i32
    %2 = arith.index_cast %1 : i32 to index
    %3 = memref.load %arg1[%2] : memref<24xi32, #tpu.memory_space<smem>>
    %c0_i32_0 = arith.constant 0 : i32
    %4 = tpu.memref_slice %arg5[%3, %c0_i32_0] : memref<384x384xf32, #tpu.memory_space<any>> -> memref<1x384xf32, #tpu.memory_space<any>>
    %c0_i32_1 = arith.constant 0 : i32
    %c0_i32_2 = arith.constant 0 : i32
    %5 = tpu.memref_slice %arg9[%c0_i32_1, %c0_i32_2] : memref<24x384xf32, #tpu.memory_space<vmem>> -> memref<1x384xf32, #tpu.memory_space<vmem>>
    tpu.enqueue_dma source(%4 : memref<1x384xf32, #tpu.memory_space<any>>) target(%5 : memref<1x384xf32, #tpu.memory_space<vmem>>) target_semaphore(%arg10 : memref<!tpu.dma_semaphore, #tpu.memory_space<semaphore_mem>>)
    %c1_i32 = arith.constant 1 : i32
    %6 = arith.addi %0, %c1_i32 : i32
    %7 = arith.index_cast %6 : i32 to index
    %8 = memref.load %arg1[%7] : memref<24xi32, #tpu.memory_space<smem>>
    %c0_i32_3 = arith.constant 0 : i32
    %9 = tpu.memref_slice %arg5[%8, %c0_i32_3] : memref<384x384xf32, #tpu.memory_space<any>> -> memref<1x384xf32, #tpu.memory_space<any>>
    %c1_i32_4 = arith.constant 1 : i32
    %c0_i32_5 = arith.constant 0 : i32
    %10 = tpu.memref_slice %arg9[%c1_i32_4, %c0_i32_5] : memref<24x384xf32, #tpu.memory_space<vmem>> -> memref<1x384xf32, #tpu.memory_space<vmem>>
    tpu.enqueue_dma source(%9 : memref<1x384xf32, #tpu.memory_space<any>>) target(%10 : memref<1x384xf32, #tpu.memory_space<vmem>>) target_semaphore(%arg10 : memref<!tpu.dma_semaphore, #tpu.memory_space<semaphore_mem>>)
    %c2_i32 = arith.constant 2 : i32
    %11 = arith.addi %0, %c2_i32 : i32
    %12 = arith.index_cast %11 : i32 to index
    %13 = memref.load %arg1[%12] : memref<24xi32, #tpu.memory_space<smem>>
    %c0_i32_6 = arith.constant 0 : i32
    %14 = tpu.memref_slice %arg5[%13, %c0_i32_6] : memref<384x384xf32, #tpu.memory_space<any>> -> memref<1x384xf32, #tpu.memory_space<any>>
    %c2_i32_7 = arith.constant 2 : i32
    %c0_i32_8 = arith.constant 0 : i32
    %15 = tpu.memref_slice %arg9[%c2_i32_7, %c0_i32_8] : memref<24x384xf32, #tpu.memory_space<vmem>> -> memref<1x384xf32, #tpu.memory_space<vmem>>
    tpu.enqueue_dma source(%14 : memref<1x384xf32, #tpu.memory_space<any>>) target(%15 : memref<1x384xf32, #tpu.memory_space<vmem>>) target_semaphore(%arg10 : memref<!tpu.dma_semaphore, #tpu.memory_space<semaphore_mem>>)
    %c3_i32 = arith.constant 3 : i32
    %16 = arith.addi %0, %c3_i32 : i32
    %17 = arith.index_cast %16 : i32 to index
    %18 = memref.load %arg1[%17] : memref<24xi32, #tpu.memory_space<smem>>
    %c0_i32_9 = arith.constant 0 : i32
    %19 = tpu.memref_slice %arg5[%18, %c0_i32_9] : memref<384x384xf32, #tpu.memory_space<any>> -> memref<1x384xf32, #tpu.memory_space<any>>
    %c3_i32_10 = arith.constant 3 : i32
    %c0_i32_11 = arith.constant 0 : i32
    %20 = tpu.memref_slice %arg9[%c3_i32_10, %c0_i32_11] : memref<24x384xf32, #tpu.memory_space<vmem>> -> memref<1x384xf32, #tpu.memory_space<vmem>>
    tpu.enqueue_dma source(%19 : memref<1x384xf32, #tpu.memory_space<any>>) target(%20 : memref<1x384xf32, #tpu.memory_space<vmem>>) target_semaphore(%arg10 : memref<!tpu.dma_semaphore, #tpu.memory_space<semaphore_mem>>)
    %c4_i32 = arith.constant 4 : i32
    %21 = arith.addi %0, %c4_i32 : i32
    %22 = arith.index_cast %21 : i32 to index
    %23 = memref.load %arg1[%22] : memref<24xi32, #tpu.memory_space<smem>>
    %c0_i32_12 = arith.constant 0 : i32
    %24 = tpu.memref_slice %arg5[%23, %c0_i32_12] : memref<384x384xf32, #tpu.memory_space<any>> -> memref<1x384xf32, #tpu.memory_space<any>>
    %c4_i32_13 = arith.constant 4 : i32
    %c0_i32_14 = arith.constant 0 : i32
    %25 = tpu.memref_slice %arg9[%c4_i32_13, %c0_i32_14] : memref<24x384xf32, #tpu.memory_space<vmem>> -> memref<1x384xf32, #tpu.memory_space<vmem>>
    tpu.enqueue_dma source(%24 : memref<1x384xf32, #tpu.memory_space<any>>) target(%25 : memref<1x384xf32, #tpu.memory_space<vmem>>) target_semaphore(%arg10 : memref<!tpu.dma_semaphore, #tpu.memory_space<semaphore_mem>>)
    %c5_i32 = arith.constant 5 : i32
    %26 = arith.addi %0, %c5_i32 : i32
    %27 = arith.index_cast %26 : i32 to index
    %28 = memref.load %arg1[%27] : memref<24xi32, #tpu.memory_space<smem>>
    %c0_i32_15 = arith.constant 0 : i32
    %29 = tpu.memref_slice %arg5[%28, %c0_i32_15] : memref<384x384xf32, #tpu.memory_space<any>> -> memref<1x384xf32, #tpu.memory_space<any>>
    %c5_i32_16 = arith.constant 5 : i32
    %c0_i32_17 = arith.constant 0 : i32
    %30 = tpu.memref_slice %arg9[%c5_i32_16, %c0_i32_17] : memref<24x384xf32, #tpu.memory_space<vmem>> -> memref<1x384xf32, #tpu.memory_space<vmem>>
    tpu.enqueue_dma source(%29 : memref<1x384xf32, #tpu.memory_space<any>>) target(%30 : memref<1x384xf32, #tpu.memory_space<vmem>>) target_semaphore(%arg10 : memref<!tpu.dma_semaphore, #tpu.memory_space<semaphore_mem>>)
    %c6_i32 = arith.constant 6 : i32
    %31 = arith.addi %0, %c6_i32 : i32
    %32 = arith.index_cast %31 : i32 to index
    %33 = memref.load %arg1[%32] : memref<24xi32, #tpu.memory_space<smem>>
    %c0_i32_18 = arith.constant 0 : i32
    %34 = tpu.memref_slice %arg5[%33, %c0_i32_18] : memref<384x384xf32, #tpu.memory_space<any>> -> memref<1x384xf32, #tpu.memory_space<any>>
    %c6_i32_19 = arith.constant 6 : i32
    %c0_i32_20 = arith.constant 0 : i32
    %35 = tpu.memref_slice %arg9[%c6_i32_19, %c0_i32_20] : memref<24x384xf32, #tpu.memory_space<vmem>> -> memref<1x384xf32, #tpu.memory_space<vmem>>
    tpu.enqueue_dma source(%34 : memref<1x384xf32, #tpu.memory_space<any>>) target(%35 : memref<1x384xf32, #tpu.memory_space<vmem>>) target_semaphore(%arg10 : memref<!tpu.dma_semaphore, #tpu.memory_space<semaphore_mem>>)
    %c7_i32 = arith.constant 7 : i32
    %36 = arith.addi %0, %c7_i32 : i32
    %37 = arith.index_cast %36 : i32 to index
    %38 = memref.load %arg1[%37] : memref<24xi32, #tpu.memory_space<smem>>
    %c0_i32_21 = arith.constant 0 : i32
    %39 = tpu.memref_slice %arg5[%38, %c0_i32_21] : memref<384x384xf32, #tpu.memory_space<any>> -> memref<1x384xf32, #tpu.memory_space<any>>
    %c7_i32_22 = arith.constant 7 : i32
    %c0_i32_23 = arith.constant 0 : i32
    %40 = tpu.memref_slice %arg9[%c7_i32_22, %c0_i32_23] : memref<24x384xf32, #tpu.memory_space<vmem>> -> memref<1x384xf32, #tpu.memory_space<vmem>>
    tpu.enqueue_dma source(%39 : memref<1x384xf32, #tpu.memory_space<any>>) target(%40 : memref<1x384xf32, #tpu.memory_space<vmem>>) target_semaphore(%arg10 : memref<!tpu.dma_semaphore, #tpu.memory_space<semaphore_mem>>)
    %c8_i32 = arith.constant 8 : i32
    %41 = arith.addi %0, %c8_i32 : i32
    %42 = arith.index_cast %41 : i32 to index
    %43 = memref.load %arg1[%42] : memref<24xi32, #tpu.memory_space<smem>>
    %c0_i32_24 = arith.constant 0 : i32
    %44 = tpu.memref_slice %arg5[%43, %c0_i32_24] : memref<384x384xf32, #tpu.memory_space<any>> -> memref<1x384xf32, #tpu.memory_space<any>>
    %c8_i32_25 = arith.constant 8 : i32
    %c0_i32_26 = arith.constant 0 : i32
    %45 = tpu.memref_slice %arg9[%c8_i32_25, %c0_i32_26] : memref<24x384xf32, #tpu.memory_space<vmem>> -> memref<1x384xf32, #tpu.memory_space<vmem>>
    tpu.enqueue_dma source(%44 : memref<1x384xf32, #tpu.memory_space<any>>) target(%45 : memref<1x384xf32, #tpu.memory_space<vmem>>) target_semaphore(%arg10 : memref<!tpu.dma_semaphore, #tpu.memory_space<semaphore_mem>>)
    %c9_i32 = arith.constant 9 : i32
    %46 = arith.addi %0, %c9_i32 : i32
    %47 = arith.index_cast %46 : i32 to index
    %48 = memref.load %arg1[%47] : memref<24xi32, #tpu.memory_space<smem>>
    %c0_i32_27 = arith.constant 0 : i32
    %49 = tpu.memref_slice %arg5[%48, %c0_i32_27] : memref<384x384xf32, #tpu.memory_space<any>> -> memref<1x384xf32, #tpu.memory_space<any>>
    %c9_i32_28 = arith.constant 9 : i32
    %c0_i32_29 = arith.constant 0 : i32
    %50 = tpu.memref_slice %arg9[%c9_i32_28, %c0_i32_29] : memref<24x384xf32, #tpu.memory_space<vmem>> -> memref<1x384xf32, #tpu.memory_space<vmem>>
    tpu.enqueue_dma source(%49 : memref<1x384xf32, #tpu.memory_space<any>>) target(%50 : memref<1x384xf32, #tpu.memory_space<vmem>>) target_semaphore(%arg10 : memref<!tpu.dma_semaphore, #tpu.memory_space<semaphore_mem>>)
    %c10_i32 = arith.constant 10 : i32
    %51 = arith.addi %0, %c10_i32 : i32
    %52 = arith.index_cast %51 : i32 to index
    %53 = memref.load %arg1[%52] : memref<24xi32, #tpu.memory_space<smem>>
    %c0_i32_30 = arith.constant 0 : i32
    %54 = tpu.memref_slice %arg5[%53, %c0_i32_30] : memref<384x384xf32, #tpu.memory_space<any>> -> memref<1x384xf32, #tpu.memory_space<any>>
    %c10_i32_31 = arith.constant 10 : i32
    %c0_i32_32 = arith.constant 0 : i32
    %55 = tpu.memref_slice %arg9[%c10_i32_31, %c0_i32_32] : memref<24x384xf32, #tpu.memory_space<vmem>> -> memref<1x384xf32, #tpu.memory_space<vmem>>
    tpu.enqueue_dma source(%54 : memref<1x384xf32, #tpu.memory_space<any>>) target(%55 : memref<1x384xf32, #tpu.memory_space<vmem>>) target_semaphore(%arg10 : memref<!tpu.dma_semaphore, #tpu.memory_space<semaphore_mem>>)
    %c11_i32 = arith.constant 11 : i32
    %56 = arith.addi %0, %c11_i32 : i32
    %57 = arith.index_cast %56 : i32 to index
    %58 = memref.load %arg1[%57] : memref<24xi32, #tpu.memory_space<smem>>
    %c0_i32_33 = arith.constant 0 : i32
    %59 = tpu.memref_slice %arg5[%58, %c0_i32_33] : memref<384x384xf32, #tpu.memory_space<any>> -> memref<1x384xf32, #tpu.memory_space<any>>
    %c11_i32_34 = arith.constant 11 : i32
    %c0_i32_35 = arith.constant 0 : i32
    %60 = tpu.memref_slice %arg9[%c11_i32_34, %c0_i32_35] : memref<24x384xf32, #tpu.memory_space<vmem>> -> memref<1x384xf32, #tpu.memory_space<vmem>>
    tpu.enqueue_dma source(%59 : memref<1x384xf32, #tpu.memory_space<any>>) target(%60 : memref<1x384xf32, #tpu.memory_space<vmem>>) target_semaphore(%arg10 : memref<!tpu.dma_semaphore, #tpu.memory_space<semaphore_mem>>)
    %c12_i32 = arith.constant 12 : i32
    %61 = arith.addi %0, %c12_i32 : i32
    %62 = arith.index_cast %61 : i32 to index
    %63 = memref.load %arg1[%62] : memref<24xi32, #tpu.memory_space<smem>>
    %c0_i32_36 = arith.constant 0 : i32
    %64 = tpu.memref_slice %arg5[%63, %c0_i32_36] : memref<384x384xf32, #tpu.memory_space<any>> -> memref<1x384xf32, #tpu.memory_space<any>>
    %c12_i32_37 = arith.constant 12 : i32
    %c0_i32_38 = arith.constant 0 : i32
    %65 = tpu.memref_slice %arg9[%c12_i32_37, %c0_i32_38] : memref<24x384xf32, #tpu.memory_space<vmem>> -> memref<1x384xf32, #tpu.memory_space<vmem>>
    tpu.enqueue_dma source(%64 : memref<1x384xf32, #tpu.memory_space<any>>) target(%65 : memref<1x384xf32, #tpu.memory_space<vmem>>) target_semaphore(%arg10 : memref<!tpu.dma_semaphore, #tpu.memory_space<semaphore_mem>>)
    %c13_i32 = arith.constant 13 : i32
    %66 = arith.addi %0, %c13_i32 : i32
    %67 = arith.index_cast %66 : i32 to index
    %68 = memref.load %arg1[%67] : memref<24xi32, #tpu.memory_space<smem>>
    %c0_i32_39 = arith.constant 0 : i32
    %69 = tpu.memref_slice %arg5[%68, %c0_i32_39] : memref<384x384xf32, #tpu.memory_space<any>> -> memref<1x384xf32, #tpu.memory_space<any>>
    %c13_i32_40 = arith.constant 13 : i32
    %c0_i32_41 = arith.constant 0 : i32
    %70 = tpu.memref_slice %arg9[%c13_i32_40, %c0_i32_41] : memref<24x384xf32, #tpu.memory_space<vmem>> -> memref<1x384xf32, #tpu.memory_space<vmem>>
    tpu.enqueue_dma source(%69 : memref<1x384xf32, #tpu.memory_space<any>>) target(%70 : memref<1x384xf32, #tpu.memory_space<vmem>>) target_semaphore(%arg10 : memref<!tpu.dma_semaphore, #tpu.memory_space<semaphore_mem>>)
    %c14_i32 = arith.constant 14 : i32
    %71 = arith.addi %0, %c14_i32 : i32
    %72 = arith.index_cast %71 : i32 to index
    %73 = memref.load %arg1[%72] : memref<24xi32, #tpu.memory_space<smem>>
    %c0_i32_42 = arith.constant 0 : i32
    %74 = tpu.memref_slice %arg5[%73, %c0_i32_42] : memref<384x384xf32, #tpu.memory_space<any>> -> memref<1x384xf32, #tpu.memory_space<any>>
    %c14_i32_43 = arith.constant 14 : i32
    %c0_i32_44 = arith.constant 0 : i32
    %75 = tpu.memref_slice %arg9[%c14_i32_43, %c0_i32_44] : memref<24x384xf32, #tpu.memory_space<vmem>> -> memref<1x384xf32, #tpu.memory_space<vmem>>
    tpu.enqueue_dma source(%74 : memref<1x384xf32, #tpu.memory_space<any>>) target(%75 : memref<1x384xf32, #tpu.memory_space<vmem>>) target_semaphore(%arg10 : memref<!tpu.dma_semaphore, #tpu.memory_space<semaphore_mem>>)
    %c15_i32 = arith.constant 15 : i32
    %76 = arith.addi %0, %c15_i32 : i32
    %77 = arith.index_cast %76 : i32 to index
    %78 = memref.load %arg1[%77] : memref<24xi32, #tpu.memory_space<smem>>
    %c0_i32_45 = arith.constant 0 : i32
    %79 = tpu.memref_slice %arg5[%78, %c0_i32_45] : memref<384x384xf32, #tpu.memory_space<any>> -> memref<1x384xf32, #tpu.memory_space<any>>
    %c15_i32_46 = arith.constant 15 : i32
    %c0_i32_47 = arith.constant 0 : i32
    %80 = tpu.memref_slice %arg9[%c15_i32_46, %c0_i32_47] : memref<24x384xf32, #tpu.memory_space<vmem>> -> memref<1x384xf32, #tpu.memory_space<vmem>>
    tpu.enqueue_dma source(%79 : memref<1x384xf32, #tpu.memory_space<any>>) target(%80 : memref<1x384xf32, #tpu.memory_space<vmem>>) target_semaphore(%arg10 : memref<!tpu.dma_semaphore, #tpu.memory_space<semaphore_mem>>)
    %c16_i32 = arith.constant 16 : i32
    %81 = arith.addi %0, %c16_i32 : i32
    %82 = arith.index_cast %81 : i32 to index
    %83 = memref.load %arg1[%82] : memref<24xi32, #tpu.memory_space<smem>>
    %c0_i32_48 = arith.constant 0 : i32
    %84 = tpu.memref_slice %arg5[%83, %c0_i32_48] : memref<384x384xf32, #tpu.memory_space<any>> -> memref<1x384xf32, #tpu.memory_space<any>>
    %c16_i32_49 = arith.constant 16 : i32
    %c0_i32_50 = arith.constant 0 : i32
    %85 = tpu.memref_slice %arg9[%c16_i32_49, %c0_i32_50] : memref<24x384xf32, #tpu.memory_space<vmem>> -> memref<1x384xf32, #tpu.memory_space<vmem>>
    tpu.enqueue_dma source(%84 : memref<1x384xf32, #tpu.memory_space<any>>) target(%85 : memref<1x384xf32, #tpu.memory_space<vmem>>) target_semaphore(%arg10 : memref<!tpu.dma_semaphore, #tpu.memory_space<semaphore_mem>>)
    %c17_i32 = arith.constant 17 : i32
    %86 = arith.addi %0, %c17_i32 : i32
    %87 = arith.index_cast %86 : i32 to index
    %88 = memref.load %arg1[%87] : memref<24xi32, #tpu.memory_space<smem>>
    %c0_i32_51 = arith.constant 0 : i32
    %89 = tpu.memref_slice %arg5[%88, %c0_i32_51] : memref<384x384xf32, #tpu.memory_space<any>> -> memref<1x384xf32, #tpu.memory_space<any>>
    %c17_i32_52 = arith.constant 17 : i32
    %c0_i32_53 = arith.constant 0 : i32
    %90 = tpu.memref_slice %arg9[%c17_i32_52, %c0_i32_53] : memref<24x384xf32, #tpu.memory_space<vmem>> -> memref<1x384xf32, #tpu.memory_space<vmem>>
    tpu.enqueue_dma source(%89 : memref<1x384xf32, #tpu.memory_space<any>>) target(%90 : memref<1x384xf32, #tpu.memory_space<vmem>>) target_semaphore(%arg10 : memref<!tpu.dma_semaphore, #tpu.memory_space<semaphore_mem>>)
    %c18_i32 = arith.constant 18 : i32
    %91 = arith.addi %0, %c18_i32 : i32
    %92 = arith.index_cast %91 : i32 to index
    %93 = memref.load %arg1[%92] : memref<24xi32, #tpu.memory_space<smem>>
    %c0_i32_54 = arith.constant 0 : i32
    %94 = tpu.memref_slice %arg5[%93, %c0_i32_54] : memref<384x384xf32, #tpu.memory_space<any>> -> memref<1x384xf32, #tpu.memory_space<any>>
    %c18_i32_55 = arith.constant 18 : i32
    %c0_i32_56 = arith.constant 0 : i32
    %95 = tpu.memref_slice %arg9[%c18_i32_55, %c0_i32_56] : memref<24x384xf32, #tpu.memory_space<vmem>> -> memref<1x384xf32, #tpu.memory_space<vmem>>
    tpu.enqueue_dma source(%94 : memref<1x384xf32, #tpu.memory_space<any>>) target(%95 : memref<1x384xf32, #tpu.memory_space<vmem>>) target_semaphore(%arg10 : memref<!tpu.dma_semaphore, #tpu.memory_space<semaphore_mem>>)
    %c19_i32 = arith.constant 19 : i32
    %96 = arith.addi %0, %c19_i32 : i32
    %97 = arith.index_cast %96 : i32 to index
    %98 = memref.load %arg1[%97] : memref<24xi32, #tpu.memory_space<smem>>
    %c0_i32_57 = arith.constant 0 : i32
    %99 = tpu.memref_slice %arg5[%98, %c0_i32_57] : memref<384x384xf32, #tpu.memory_space<any>> -> memref<1x384xf32, #tpu.memory_space<any>>
    %c19_i32_58 = arith.constant 19 : i32
    %c0_i32_59 = arith.constant 0 : i32
    %100 = tpu.memref_slice %arg9[%c19_i32_58, %c0_i32_59] : memref<24x384xf32, #tpu.memory_space<vmem>> -> memref<1x384xf32, #tpu.memory_space<vmem>>
    tpu.enqueue_dma source(%99 : memref<1x384xf32, #tpu.memory_space<any>>) target(%100 : memref<1x384xf32, #tpu.memory_space<vmem>>) target_semaphore(%arg10 : memref<!tpu.dma_semaphore, #tpu.memory_space<semaphore_mem>>)
    %c20_i32 = arith.constant 20 : i32
    %101 = arith.addi %0, %c20_i32 : i32
    %102 = arith.index_cast %101 : i32 to index
    %103 = memref.load %arg1[%102] : memref<24xi32, #tpu.memory_space<smem>>
    %c0_i32_60 = arith.constant 0 : i32
    %104 = tpu.memref_slice %arg5[%103, %c0_i32_60] : memref<384x384xf32, #tpu.memory_space<any>> -> memref<1x384xf32, #tpu.memory_space<any>>
    %c20_i32_61 = arith.constant 20 : i32
    %c0_i32_62 = arith.constant 0 : i32
    %105 = tpu.memref_slice %arg9[%c20_i32_61, %c0_i32_62] : memref<24x384xf32, #tpu.memory_space<vmem>> -> memref<1x384xf32, #tpu.memory_space<vmem>>
    tpu.enqueue_dma source(%104 : memref<1x384xf32, #tpu.memory_space<any>>) target(%105 : memref<1x384xf32, #tpu.memory_space<vmem>>) target_semaphore(%arg10 : memref<!tpu.dma_semaphore, #tpu.memory_space<semaphore_mem>>)
    %c21_i32 = arith.constant 21 : i32
    %106 = arith.addi %0, %c21_i32 : i32
    %107 = arith.index_cast %106 : i32 to index
    %108 = memref.load %arg1[%107] : memref<24xi32, #tpu.memory_space<smem>>
    %c0_i32_63 = arith.constant 0 : i32
    %109 = tpu.memref_slice %arg5[%108, %c0_i32_63] : memref<384x384xf32, #tpu.memory_space<any>> -> memref<1x384xf32, #tpu.memory_space<any>>
    %c21_i32_64 = arith.constant 21 : i32
    %c0_i32_65 = arith.constant 0 : i32
    %110 = tpu.memref_slice %arg9[%c21_i32_64, %c0_i32_65] : memref<24x384xf32, #tpu.memory_space<vmem>> -> memref<1x384xf32, #tpu.memory_space<vmem>>
    tpu.enqueue_dma source(%109 : memref<1x384xf32, #tpu.memory_space<any>>) target(%110 : memref<1x384xf32, #tpu.memory_space<vmem>>) target_semaphore(%arg10 : memref<!tpu.dma_semaphore, #tpu.memory_space<semaphore_mem>>)
    %c22_i32 = arith.constant 22 : i32
    %111 = arith.addi %0, %c22_i32 : i32
    %112 = arith.index_cast %111 : i32 to index
    %113 = memref.load %arg1[%112] : memref<24xi32, #tpu.memory_space<smem>>
    %c0_i32_66 = arith.constant 0 : i32
    %114 = tpu.memref_slice %arg5[%113, %c0_i32_66] : memref<384x384xf32, #tpu.memory_space<any>> -> memref<1x384xf32, #tpu.memory_space<any>>
    %c22_i32_67 = arith.constant 22 : i32
    %c0_i32_68 = arith.constant 0 : i32
    %115 = tpu.memref_slice %arg9[%c22_i32_67, %c0_i32_68] : memref<24x384xf32, #tpu.memory_space<vmem>> -> memref<1x384xf32, #tpu.memory_space<vmem>>
    tpu.enqueue_dma source(%114 : memref<1x384xf32, #tpu.memory_space<any>>) target(%115 : memref<1x384xf32, #tpu.memory_space<vmem>>) target_semaphore(%arg10 : memref<!tpu.dma_semaphore, #tpu.memory_space<semaphore_mem>>)
    %c23_i32 = arith.constant 23 : i32
    %116 = arith.addi %0, %c23_i32 : i32
    %117 = arith.index_cast %116 : i32 to index
    %118 = memref.load %arg1[%117] : memref<24xi32, #tpu.memory_space<smem>>
    %c0_i32_69 = arith.constant 0 : i32
    %119 = tpu.memref_slice %arg5[%118, %c0_i32_69] : memref<384x384xf32, #tpu.memory_space<any>> -> memref<1x384xf32, #tpu.memory_space<any>>
    %c23_i32_70 = arith.constant 23 : i32
    %c0_i32_71 = arith.constant 0 : i32
    %120 = tpu.memref_slice %arg9[%c23_i32_70, %c0_i32_71] : memref<24x384xf32, #tpu.memory_space<vmem>> -> memref<1x384xf32, #tpu.memory_space<vmem>>
    tpu.enqueue_dma source(%119 : memref<1x384xf32, #tpu.memory_space<any>>) target(%120 : memref<1x384xf32, #tpu.memory_space<vmem>>) target_semaphore(%arg10 : memref<!tpu.dma_semaphore, #tpu.memory_space<semaphore_mem>>)
    %c0_i32_72 = arith.constant 0 : i32
    %121 = arith.cmpi eq, %arg0, %c0_i32_72 : i32
    %122 = arith.extui %121 : i1 to i32
    %c0_i32_73 = arith.constant 0 : i32
    %123 = arith.cmpi ne, %122, %c0_i32_73 : i32
    scf.if %123 {
      %c0_254 = arith.constant 0 : index
      %c0_255 = arith.constant 0 : index
      %402 = vector.load %arg2[%c0_254, %c0_255] : memref<384x128xbf16, #tpu.memory_space<vmem>>, vector<384x128xbf16>
      %c0_256 = arith.constant 0 : index
      %c0_257 = arith.constant 0 : index
      %403 = vector.load %arg3[%c0_256, %c0_257] : memref<128x256xbf16, #tpu.memory_space<vmem>>, vector<128x256xbf16>
      %cst_258 = arith.constant dense<0.000000e+00> : vector<384x256xf32>
      %404 = tpu.matmul %402, %403, %cst_258 {dimension_numbers = #tpu.dot_dimension_numbers<[1], [0], [0], [1], [0, 0, 1, 1], [], []>} : vector<384x128xbf16>, vector<128x256xbf16>, vector<384x256xf32> -> vector<384x256xf32>
      %405 = vector.extract_strided_slice %404 {offsets = [0, 0], sizes = [384, 128], strides = [1, 1]} : vector<384x256xf32> to vector<384x128xf32>
      %c0_259 = arith.constant 0 : index
      %c0_260 = arith.constant 0 : index
      %406 = vector.load %arg7[%c0_259, %c0_260] : memref<384x128xf32, #tpu.memory_space<vmem>>, vector<384x128xf32>
      tpu.vector_store %arg7[%c0_259, %c0_260], %405 {strides = array<i32>} : memref<384x128xf32, #tpu.memory_space<vmem>>, vector<384x128xf32>,
      %407 = vector.extract_strided_slice %404 {offsets = [0, 128], sizes = [384, 128], strides = [1, 1]} : vector<384x256xf32> to vector<384x128xf32>
      %c0_261 = arith.constant 0 : index
      %c0_262 = arith.constant 0 : index
      %408 = vector.load %arg8[%c0_261, %c0_262] : memref<384x128xf32, #tpu.memory_space<vmem>>, vector<384x128xf32>
      tpu.vector_store %arg8[%c0_261, %c0_262], %407 {strides = array<i32>} : memref<384x128xf32, #tpu.memory_space<vmem>>, vector<384x128xf32>,
    } else {
    }
    %c0_i32_74 = arith.constant 0 : i32
    %124 = arith.addi %0, %c0_i32_74 : i32
    %125 = arith.index_cast %124 : i32 to index
    %126 = memref.load %arg1[%125] : memref<24xi32, #tpu.memory_space<smem>>
    %127 = arith.index_cast %126 : i32 to index
    %c0 = arith.constant 0 : index
    %128 = vector.load %arg7[%127, %c0] : memref<384x128xf32, #tpu.memory_space<vmem>>, vector<1x128xf32>
    %c0_75 = arith.constant 0 : index
    %c0_76 = arith.constant 0 : index
    %129 = vector.load %arg6[%c0_75, %c0_76] : memref<24x128xf32, #tpu.memory_space<vmem>>, vector<1x128xf32>
    tpu.vector_store %arg6[%c0_75, %c0_76], %128 {strides = array<i32>} : memref<24x128xf32, #tpu.memory_space<vmem>>, vector<1x128xf32>,
    %c1_i32_77 = arith.constant 1 : i32
    %130 = arith.addi %0, %c1_i32_77 : i32
    %131 = arith.index_cast %130 : i32 to index
    %132 = memref.load %arg1[%131] : memref<24xi32, #tpu.memory_space<smem>>
    %133 = arith.index_cast %132 : i32 to index
    %c0_78 = arith.constant 0 : index
    %134 = vector.load %arg7[%133, %c0_78] : memref<384x128xf32, #tpu.memory_space<vmem>>, vector<1x128xf32>
    %c1 = arith.constant 1 : index
    %c0_79 = arith.constant 0 : index
    %135 = vector.load %arg6[%c1, %c0_79] : memref<24x128xf32, #tpu.memory_space<vmem>>, vector<1x128xf32>
    tpu.vector_store %arg6[%c1, %c0_79], %134 {strides = array<i32>} : memref<24x128xf32, #tpu.memory_space<vmem>>, vector<1x128xf32>,
    %c2_i32_80 = arith.constant 2 : i32
    %136 = arith.addi %0, %c2_i32_80 : i32
    %137 = arith.index_cast %136 : i32 to index
    %138 = memref.load %arg1[%137] : memref<24xi32, #tpu.memory_space<smem>>
    %139 = arith.index_cast %138 : i32 to index
    %c0_81 = arith.constant 0 : index
    %140 = vector.load %arg7[%139, %c0_81] : memref<384x128xf32, #tpu.memory_space<vmem>>, vector<1x128xf32>
    %c2 = arith.constant 2 : index
    %c0_82 = arith.constant 0 : index
    %141 = vector.load %arg6[%c2, %c0_82] : memref<24x128xf32, #tpu.memory_space<vmem>>, vector<1x128xf32>
    tpu.vector_store %arg6[%c2, %c0_82], %140 {strides = array<i32>} : memref<24x128xf32, #tpu.memory_space<vmem>>, vector<1x128xf32>,
    %c3_i32_83 = arith.constant 3 : i32
    %142 = arith.addi %0, %c3_i32_83 : i32
    %143 = arith.index_cast %142 : i32 to index
    %144 = memref.load %arg1[%143] : memref<24xi32, #tpu.memory_space<smem>>
    %145 = arith.index_cast %144 : i32 to index
    %c0_84 = arith.constant 0 : index
    %146 = vector.load %arg7[%145, %c0_84] : memref<384x128xf32, #tpu.memory_space<vmem>>, vector<1x128xf32>
    %c3 = arith.constant 3 : index
    %c0_85 = arith.constant 0 : index
    %147 = vector.load %arg6[%c3, %c0_85] : memref<24x128xf32, #tpu.memory_space<vmem>>, vector<1x128xf32>
    tpu.vector_store %arg6[%c3, %c0_85], %146 {strides = array<i32>} : memref<24x128xf32, #tpu.memory_space<vmem>>, vector<1x128xf32>,
    %c4_i32_86 = arith.constant 4 : i32
    %148 = arith.addi %0, %c4_i32_86 : i32
    %149 = arith.index_cast %148 : i32 to index
    %150 = memref.load %arg1[%149] : memref<24xi32, #tpu.memory_space<smem>>
    %151 = arith.index_cast %150 : i32 to index
    %c0_87 = arith.constant 0 : index
    %152 = vector.load %arg7[%151, %c0_87] : memref<384x128xf32, #tpu.memory_space<vmem>>, vector<1x128xf32>
    %c4 = arith.constant 4 : index
    %c0_88 = arith.constant 0 : index
    %153 = vector.load %arg6[%c4, %c0_88] : memref<24x128xf32, #tpu.memory_space<vmem>>, vector<1x128xf32>
    tpu.vector_store %arg6[%c4, %c0_88], %152 {strides = array<i32>} : memref<24x128xf32, #tpu.memory_space<vmem>>, vector<1x128xf32>,
    %c5_i32_89 = arith.constant 5 : i32
    %154 = arith.addi %0, %c5_i32_89 : i32
    %155 = arith.index_cast %154 : i32 to index
    %156 = memref.load %arg1[%155] : memref<24xi32, #tpu.memory_space<smem>>
    %157 = arith.index_cast %156 : i32 to index
    %c0_90 = arith.constant 0 : index
    %158 = vector.load %arg7[%157, %c0_90] : memref<384x128xf32, #tpu.memory_space<vmem>>, vector<1x128xf32>
    %c5 = arith.constant 5 : index
    %c0_91 = arith.constant 0 : index
    %159 = vector.load %arg6[%c5, %c0_91] : memref<24x128xf32, #tpu.memory_space<vmem>>, vector<1x128xf32>
    tpu.vector_store %arg6[%c5, %c0_91], %158 {strides = array<i32>} : memref<24x128xf32, #tpu.memory_space<vmem>>, vector<1x128xf32>,
    %c6_i32_92 = arith.constant 6 : i32
    %160 = arith.addi %0, %c6_i32_92 : i32
    %161 = arith.index_cast %160 : i32 to index
    %162 = memref.load %arg1[%161] : memref<24xi32, #tpu.memory_space<smem>>
    %163 = arith.index_cast %162 : i32 to index
    %c0_93 = arith.constant 0 : index
    %164 = vector.load %arg7[%163, %c0_93] : memref<384x128xf32, #tpu.memory_space<vmem>>, vector<1x128xf32>
    %c6 = arith.constant 6 : index
    %c0_94 = arith.constant 0 : index
    %165 = vector.load %arg6[%c6, %c0_94] : memref<24x128xf32, #tpu.memory_space<vmem>>, vector<1x128xf32>
    tpu.vector_store %arg6[%c6, %c0_94], %164 {strides = array<i32>} : memref<24x128xf32, #tpu.memory_space<vmem>>, vector<1x128xf32>,
    %c7_i32_95 = arith.constant 7 : i32
    %166 = arith.addi %0, %c7_i32_95 : i32
    %167 = arith.index_cast %166 : i32 to index
    %168 = memref.load %arg1[%167] : memref<24xi32, #tpu.memory_space<smem>>
    %169 = arith.index_cast %168 : i32 to index
    %c0_96 = arith.constant 0 : index
    %170 = vector.load %arg7[%169, %c0_96] : memref<384x128xf32, #tpu.memory_space<vmem>>, vector<1x128xf32>
    %c7 = arith.constant 7 : index
    %c0_97 = arith.constant 0 : index
    %171 = vector.load %arg6[%c7, %c0_97] : memref<24x128xf32, #tpu.memory_space<vmem>>, vector<1x128xf32>
    tpu.vector_store %arg6[%c7, %c0_97], %170 {strides = array<i32>} : memref<24x128xf32, #tpu.memory_space<vmem>>, vector<1x128xf32>,
    %c8_i32_98 = arith.constant 8 : i32
    %172 = arith.addi %0, %c8_i32_98 : i32
    %173 = arith.index_cast %172 : i32 to index
    %174 = memref.load %arg1[%173] : memref<24xi32, #tpu.memory_space<smem>>
    %175 = arith.index_cast %174 : i32 to index
    %c0_99 = arith.constant 0 : index
    %176 = vector.load %arg7[%175, %c0_99] : memref<384x128xf32, #tpu.memory_space<vmem>>, vector<1x128xf32>
    %c8 = arith.constant 8 : index
    %c0_100 = arith.constant 0 : index
    %177 = vector.load %arg6[%c8, %c0_100] : memref<24x128xf32, #tpu.memory_space<vmem>>, vector<1x128xf32>
    tpu.vector_store %arg6[%c8, %c0_100], %176 {strides = array<i32>} : memref<24x128xf32, #tpu.memory_space<vmem>>, vector<1x128xf32>,
    %c9_i32_101 = arith.constant 9 : i32
    %178 = arith.addi %0, %c9_i32_101 : i32
    %179 = arith.index_cast %178 : i32 to index
    %180 = memref.load %arg1[%179] : memref<24xi32, #tpu.memory_space<smem>>
    %181 = arith.index_cast %180 : i32 to index
    %c0_102 = arith.constant 0 : index
    %182 = vector.load %arg7[%181, %c0_102] : memref<384x128xf32, #tpu.memory_space<vmem>>, vector<1x128xf32>
    %c9 = arith.constant 9 : index
    %c0_103 = arith.constant 0 : index
    %183 = vector.load %arg6[%c9, %c0_103] : memref<24x128xf32, #tpu.memory_space<vmem>>, vector<1x128xf32>
    tpu.vector_store %arg6[%c9, %c0_103], %182 {strides = array<i32>} : memref<24x128xf32, #tpu.memory_space<vmem>>, vector<1x128xf32>,
    %c10_i32_104 = arith.constant 10 : i32
    %184 = arith.addi %0, %c10_i32_104 : i32
    %185 = arith.index_cast %184 : i32 to index
    %186 = memref.load %arg1[%185] : memref<24xi32, #tpu.memory_space<smem>>
    %187 = arith.index_cast %186 : i32 to index
    %c0_105 = arith.constant 0 : index
    %188 = vector.load %arg7[%187, %c0_105] : memref<384x128xf32, #tpu.memory_space<vmem>>, vector<1x128xf32>
    %c10 = arith.constant 10 : index
    %c0_106 = arith.constant 0 : index
    %189 = vector.load %arg6[%c10, %c0_106] : memref<24x128xf32, #tpu.memory_space<vmem>>, vector<1x128xf32>
    tpu.vector_store %arg6[%c10, %c0_106], %188 {strides = array<i32>} : memref<24x128xf32, #tpu.memory_space<vmem>>, vector<1x128xf32>,
    %c11_i32_107 = arith.constant 11 : i32
    %190 = arith.addi %0, %c11_i32_107 : i32
    %191 = arith.index_cast %190 : i32 to index
    %192 = memref.load %arg1[%191] : memref<24xi32, #tpu.memory_space<smem>>
    %193 = arith.index_cast %192 : i32 to index
    %c0_108 = arith.constant 0 : index
    %194 = vector.load %arg7[%193, %c0_108] : memref<384x128xf32, #tpu.memory_space<vmem>>, vector<1x128xf32>
    %c11 = arith.constant 11 : index
    %c0_109 = arith.constant 0 : index
    %195 = vector.load %arg6[%c11, %c0_109] : memref<24x128xf32, #tpu.memory_space<vmem>>, vector<1x128xf32>
    tpu.vector_store %arg6[%c11, %c0_109], %194 {strides = array<i32>} : memref<24x128xf32, #tpu.memory_space<vmem>>, vector<1x128xf32>,
    %c12_i32_110 = arith.constant 12 : i32
    %196 = arith.addi %0, %c12_i32_110 : i32
    %197 = arith.index_cast %196 : i32 to index
    %198 = memref.load %arg1[%197] : memref<24xi32, #tpu.memory_space<smem>>
    %199 = arith.index_cast %198 : i32 to index
    %c0_111 = arith.constant 0 : index
    %200 = vector.load %arg7[%199, %c0_111] : memref<384x128xf32, #tpu.memory_space<vmem>>, vector<1x128xf32>
    %c12 = arith.constant 12 : index
    %c0_112 = arith.constant 0 : index
    %201 = vector.load %arg6[%c12, %c0_112] : memref<24x128xf32, #tpu.memory_space<vmem>>, vector<1x128xf32>
    tpu.vector_store %arg6[%c12, %c0_112], %200 {strides = array<i32>} : memref<24x128xf32, #tpu.memory_space<vmem>>, vector<1x128xf32>,
    %c13_i32_113 = arith.constant 13 : i32
    %202 = arith.addi %0, %c13_i32_113 : i32
    %203 = arith.index_cast %202 : i32 to index
    %204 = memref.load %arg1[%203] : memref<24xi32, #tpu.memory_space<smem>>
    %205 = arith.index_cast %204 : i32 to index
    %c0_114 = arith.constant 0 : index
    %206 = vector.load %arg7[%205, %c0_114] : memref<384x128xf32, #tpu.memory_space<vmem>>, vector<1x128xf32>
    %c13 = arith.constant 13 : index
    %c0_115 = arith.constant 0 : index
    %207 = vector.load %arg6[%c13, %c0_115] : memref<24x128xf32, #tpu.memory_space<vmem>>, vector<1x128xf32>
    tpu.vector_store %arg6[%c13, %c0_115], %206 {strides = array<i32>} : memref<24x128xf32, #tpu.memory_space<vmem>>, vector<1x128xf32>,
    %c14_i32_116 = arith.constant 14 : i32
    %208 = arith.addi %0, %c14_i32_116 : i32
    %209 = arith.index_cast %208 : i32 to index
    %210 = memref.load %arg1[%209] : memref<24xi32, #tpu.memory_space<smem>>
    %211 = arith.index_cast %210 : i32 to index
    %c0_117 = arith.constant 0 : index
    %212 = vector.load %arg7[%211, %c0_117] : memref<384x128xf32, #tpu.memory_space<vmem>>, vector<1x128xf32>
    %c14 = arith.constant 14 : index
    %c0_118 = arith.constant 0 : index
    %213 = vector.load %arg6[%c14, %c0_118] : memref<24x128xf32, #tpu.memory_space<vmem>>, vector<1x128xf32>
    tpu.vector_store %arg6[%c14, %c0_118], %212 {strides = array<i32>} : memref<24x128xf32, #tpu.memory_space<vmem>>, vector<1x128xf32>,
    %c15_i32_119 = arith.constant 15 : i32
    %214 = arith.addi %0, %c15_i32_119 : i32
    %215 = arith.index_cast %214 : i32 to index
    %216 = memref.load %arg1[%215] : memref<24xi32, #tpu.memory_space<smem>>
    %217 = arith.index_cast %216 : i32 to index
    %c0_120 = arith.constant 0 : index
    %218 = vector.load %arg7[%217, %c0_120] : memref<384x128xf32, #tpu.memory_space<vmem>>, vector<1x128xf32>
    %c15 = arith.constant 15 : index
    %c0_121 = arith.constant 0 : index
    %219 = vector.load %arg6[%c15, %c0_121] : memref<24x128xf32, #tpu.memory_space<vmem>>, vector<1x128xf32>
    tpu.vector_store %arg6[%c15, %c0_121], %218 {strides = array<i32>} : memref<24x128xf32, #tpu.memory_space<vmem>>, vector<1x128xf32>,
    %c16_i32_122 = arith.constant 16 : i32
    %220 = arith.addi %0, %c16_i32_122 : i32
    %221 = arith.index_cast %220 : i32 to index
    %222 = memref.load %arg1[%221] : memref<24xi32, #tpu.memory_space<smem>>
    %223 = arith.index_cast %222 : i32 to index
    %c0_123 = arith.constant 0 : index
    %224 = vector.load %arg7[%223, %c0_123] : memref<384x128xf32, #tpu.memory_space<vmem>>, vector<1x128xf32>
    %c16 = arith.constant 16 : index
    %c0_124 = arith.constant 0 : index
    %225 = vector.load %arg6[%c16, %c0_124] : memref<24x128xf32, #tpu.memory_space<vmem>>, vector<1x128xf32>
    tpu.vector_store %arg6[%c16, %c0_124], %224 {strides = array<i32>} : memref<24x128xf32, #tpu.memory_space<vmem>>, vector<1x128xf32>,
    %c17_i32_125 = arith.constant 17 : i32
    %226 = arith.addi %0, %c17_i32_125 : i32
    %227 = arith.index_cast %226 : i32 to index
    %228 = memref.load %arg1[%227] : memref<24xi32, #tpu.memory_space<smem>>
    %229 = arith.index_cast %228 : i32 to index
    %c0_126 = arith.constant 0 : index
    %230 = vector.load %arg7[%229, %c0_126] : memref<384x128xf32, #tpu.memory_space<vmem>>, vector<1x128xf32>
    %c17 = arith.constant 17 : index
    %c0_127 = arith.constant 0 : index
    %231 = vector.load %arg6[%c17, %c0_127] : memref<24x128xf32, #tpu.memory_space<vmem>>, vector<1x128xf32>
    tpu.vector_store %arg6[%c17, %c0_127], %230 {strides = array<i32>} : memref<24x128xf32, #tpu.memory_space<vmem>>, vector<1x128xf32>,
    %c18_i32_128 = arith.constant 18 : i32
    %232 = arith.addi %0, %c18_i32_128 : i32
    %233 = arith.index_cast %232 : i32 to index
    %234 = memref.load %arg1[%233] : memref<24xi32, #tpu.memory_space<smem>>
    %235 = arith.index_cast %234 : i32 to index
    %c0_129 = arith.constant 0 : index
    %236 = vector.load %arg7[%235, %c0_129] : memref<384x128xf32, #tpu.memory_space<vmem>>, vector<1x128xf32>
    %c18 = arith.constant 18 : index
    %c0_130 = arith.constant 0 : index
    %237 = vector.load %arg6[%c18, %c0_130] : memref<24x128xf32, #tpu.memory_space<vmem>>, vector<1x128xf32>
    tpu.vector_store %arg6[%c18, %c0_130], %236 {strides = array<i32>} : memref<24x128xf32, #tpu.memory_space<vmem>>, vector<1x128xf32>,
    %c19_i32_131 = arith.constant 19 : i32
    %238 = arith.addi %0, %c19_i32_131 : i32
    %239 = arith.index_cast %238 : i32 to index
    %240 = memref.load %arg1[%239] : memref<24xi32, #tpu.memory_space<smem>>
    %241 = arith.index_cast %240 : i32 to index
    %c0_132 = arith.constant 0 : index
    %242 = vector.load %arg7[%241, %c0_132] : memref<384x128xf32, #tpu.memory_space<vmem>>, vector<1x128xf32>
    %c19 = arith.constant 19 : index
    %c0_133 = arith.constant 0 : index
    %243 = vector.load %arg6[%c19, %c0_133] : memref<24x128xf32, #tpu.memory_space<vmem>>, vector<1x128xf32>
    tpu.vector_store %arg6[%c19, %c0_133], %242 {strides = array<i32>} : memref<24x128xf32, #tpu.memory_space<vmem>>, vector<1x128xf32>,
    %c20_i32_134 = arith.constant 20 : i32
    %244 = arith.addi %0, %c20_i32_134 : i32
    %245 = arith.index_cast %244 : i32 to index
    %246 = memref.load %arg1[%245] : memref<24xi32, #tpu.memory_space<smem>>
    %247 = arith.index_cast %246 : i32 to index
    %c0_135 = arith.constant 0 : index
    %248 = vector.load %arg7[%247, %c0_135] : memref<384x128xf32, #tpu.memory_space<vmem>>, vector<1x128xf32>
    %c20 = arith.constant 20 : index
    %c0_136 = arith.constant 0 : index
    %249 = vector.load %arg6[%c20, %c0_136] : memref<24x128xf32, #tpu.memory_space<vmem>>, vector<1x128xf32>
    tpu.vector_store %arg6[%c20, %c0_136], %248 {strides = array<i32>} : memref<24x128xf32, #tpu.memory_space<vmem>>, vector<1x128xf32>,
    %c21_i32_137 = arith.constant 21 : i32
    %250 = arith.addi %0, %c21_i32_137 : i32
    %251 = arith.index_cast %250 : i32 to index
    %252 = memref.load %arg1[%251] : memref<24xi32, #tpu.memory_space<smem>>
    %253 = arith.index_cast %252 : i32 to index
    %c0_138 = arith.constant 0 : index
    %254 = vector.load %arg7[%253, %c0_138] : memref<384x128xf32, #tpu.memory_space<vmem>>, vector<1x128xf32>
    %c21 = arith.constant 21 : index
    %c0_139 = arith.constant 0 : index
    %255 = vector.load %arg6[%c21, %c0_139] : memref<24x128xf32, #tpu.memory_space<vmem>>, vector<1x128xf32>
    tpu.vector_store %arg6[%c21, %c0_139], %254 {strides = array<i32>} : memref<24x128xf32, #tpu.memory_space<vmem>>, vector<1x128xf32>,
    %c22_i32_140 = arith.constant 22 : i32
    %256 = arith.addi %0, %c22_i32_140 : i32
    %257 = arith.index_cast %256 : i32 to index
    %258 = memref.load %arg1[%257] : memref<24xi32, #tpu.memory_space<smem>>
    %259 = arith.index_cast %258 : i32 to index
    %c0_141 = arith.constant 0 : index
    %260 = vector.load %arg7[%259, %c0_141] : memref<384x128xf32, #tpu.memory_space<vmem>>, vector<1x128xf32>
    %c22 = arith.constant 22 : index
    %c0_142 = arith.constant 0 : index
    %261 = vector.load %arg6[%c22, %c0_142] : memref<24x128xf32, #tpu.memory_space<vmem>>, vector<1x128xf32>
    tpu.vector_store %arg6[%c22, %c0_142], %260 {strides = array<i32>} : memref<24x128xf32, #tpu.memory_space<vmem>>, vector<1x128xf32>,
    %c23_i32_143 = arith.constant 23 : i32
    %262 = arith.addi %0, %c23_i32_143 : i32
    %263 = arith.index_cast %262 : i32 to index
    %264 = memref.load %arg1[%263] : memref<24xi32, #tpu.memory_space<smem>>
    %265 = arith.index_cast %264 : i32 to index
    %c0_144 = arith.constant 0 : index
    %266 = vector.load %arg7[%265, %c0_144] : memref<384x128xf32, #tpu.memory_space<vmem>>, vector<1x128xf32>
    %c23 = arith.constant 23 : index
    %c0_145 = arith.constant 0 : index
    %267 = vector.load %arg6[%c23, %c0_145] : memref<24x128xf32, #tpu.memory_space<vmem>>, vector<1x128xf32>
    tpu.vector_store %arg6[%c23, %c0_145], %266 {strides = array<i32>} : memref<24x128xf32, #tpu.memory_space<vmem>>, vector<1x128xf32>,
    %c0_i32_146 = arith.constant 0 : i32
    %268 = arith.addi %0, %c0_i32_146 : i32
    %269 = arith.index_cast %268 : i32 to index
    %270 = memref.load %arg1[%269] : memref<24xi32, #tpu.memory_space<smem>>
    %c0_i32_147 = arith.constant 0 : i32
    %271 = tpu.memref_slice %arg5[%270, %c0_i32_147] : memref<384x384xf32, #tpu.memory_space<any>> -> memref<1x384xf32, #tpu.memory_space<any>>
    %c0_i32_148 = arith.constant 0 : i32
    %c0_i32_149 = arith.constant 0 : i32
    %272 = tpu.memref_slice %arg9[%c0_i32_148, %c0_i32_149] : memref<24x384xf32, #tpu.memory_space<vmem>> -> memref<1x384xf32, #tpu.memory_space<vmem>>
    tpu.wait_dma2 semaphore(%arg10 : memref<!tpu.dma_semaphore, #tpu.memory_space<semaphore_mem>>) src(%271 : memref<1x384xf32, #tpu.memory_space<any>>) dst(%272 : memref<1x384xf32, #tpu.memory_space<vmem>>)
    %c1_i32_150 = arith.constant 1 : i32
    %273 = arith.addi %0, %c1_i32_150 : i32
    %274 = arith.index_cast %273 : i32 to index
    %275 = memref.load %arg1[%274] : memref<24xi32, #tpu.memory_space<smem>>
    %c0_i32_151 = arith.constant 0 : i32
    %276 = tpu.memref_slice %arg5[%275, %c0_i32_151] : memref<384x384xf32, #tpu.memory_space<any>> -> memref<1x384xf32, #tpu.memory_space<any>>
    %c1_i32_152 = arith.constant 1 : i32
    %c0_i32_153 = arith.constant 0 : i32
    %277 = tpu.memref_slice %arg9[%c1_i32_152, %c0_i32_153] : memref<24x384xf32, #tpu.memory_space<vmem>> -> memref<1x384xf32, #tpu.memory_space<vmem>>
    tpu.wait_dma2 semaphore(%arg10 : memref<!tpu.dma_semaphore, #tpu.memory_space<semaphore_mem>>) src(%276 : memref<1x384xf32, #tpu.memory_space<any>>) dst(%277 : memref<1x384xf32, #tpu.memory_space<vmem>>)
    %c2_i32_154 = arith.constant 2 : i32
    %278 = arith.addi %0, %c2_i32_154 : i32
    %279 = arith.index_cast %278 : i32 to index
    %280 = memref.load %arg1[%279] : memref<24xi32, #tpu.memory_space<smem>>
    %c0_i32_155 = arith.constant 0 : i32
    %281 = tpu.memref_slice %arg5[%280, %c0_i32_155] : memref<384x384xf32, #tpu.memory_space<any>> -> memref<1x384xf32, #tpu.memory_space<any>>
    %c2_i32_156 = arith.constant 2 : i32
    %c0_i32_157 = arith.constant 0 : i32
    %282 = tpu.memref_slice %arg9[%c2_i32_156, %c0_i32_157] : memref<24x384xf32, #tpu.memory_space<vmem>> -> memref<1x384xf32, #tpu.memory_space<vmem>>
    tpu.wait_dma2 semaphore(%arg10 : memref<!tpu.dma_semaphore, #tpu.memory_space<semaphore_mem>>) src(%281 : memref<1x384xf32, #tpu.memory_space<any>>) dst(%282 : memref<1x384xf32, #tpu.memory_space<vmem>>)
    %c3_i32_158 = arith.constant 3 : i32
    %283 = arith.addi %0, %c3_i32_158 : i32
    %284 = arith.index_cast %283 : i32 to index
    %285 = memref.load %arg1[%284] : memref<24xi32, #tpu.memory_space<smem>>
    %c0_i32_159 = arith.constant 0 : i32
    %286 = tpu.memref_slice %arg5[%285, %c0_i32_159] : memref<384x384xf32, #tpu.memory_space<any>> -> memref<1x384xf32, #tpu.memory_space<any>>
    %c3_i32_160 = arith.constant 3 : i32
    %c0_i32_161 = arith.constant 0 : i32
    %287 = tpu.memref_slice %arg9[%c3_i32_160, %c0_i32_161] : memref<24x384xf32, #tpu.memory_space<vmem>> -> memref<1x384xf32, #tpu.memory_space<vmem>>
    tpu.wait_dma2 semaphore(%arg10 : memref<!tpu.dma_semaphore, #tpu.memory_space<semaphore_mem>>) src(%286 : memref<1x384xf32, #tpu.memory_space<any>>) dst(%287 : memref<1x384xf32, #tpu.memory_space<vmem>>)
    %c4_i32_162 = arith.constant 4 : i32
    %288 = arith.addi %0, %c4_i32_162 : i32
    %289 = arith.index_cast %288 : i32 to index
    %290 = memref.load %arg1[%289] : memref<24xi32, #tpu.memory_space<smem>>
    %c0_i32_163 = arith.constant 0 : i32
    %291 = tpu.memref_slice %arg5[%290, %c0_i32_163] : memref<384x384xf32, #tpu.memory_space<any>> -> memref<1x384xf32, #tpu.memory_space<any>>
    %c4_i32_164 = arith.constant 4 : i32
    %c0_i32_165 = arith.constant 0 : i32
    %292 = tpu.memref_slice %arg9[%c4_i32_164, %c0_i32_165] : memref<24x384xf32, #tpu.memory_space<vmem>> -> memref<1x384xf32, #tpu.memory_space<vmem>>
    tpu.wait_dma2 semaphore(%arg10 : memref<!tpu.dma_semaphore, #tpu.memory_space<semaphore_mem>>) src(%291 : memref<1x384xf32, #tpu.memory_space<any>>) dst(%292 : memref<1x384xf32, #tpu.memory_space<vmem>>)
    %c5_i32_166 = arith.constant 5 : i32
    %293 = arith.addi %0, %c5_i32_166 : i32
    %294 = arith.index_cast %293 : i32 to index
    %295 = memref.load %arg1[%294] : memref<24xi32, #tpu.memory_space<smem>>
    %c0_i32_167 = arith.constant 0 : i32
    %296 = tpu.memref_slice %arg5[%295, %c0_i32_167] : memref<384x384xf32, #tpu.memory_space<any>> -> memref<1x384xf32, #tpu.memory_space<any>>
    %c5_i32_168 = arith.constant 5 : i32
    %c0_i32_169 = arith.constant 0 : i32
    %297 = tpu.memref_slice %arg9[%c5_i32_168, %c0_i32_169] : memref<24x384xf32, #tpu.memory_space<vmem>> -> memref<1x384xf32, #tpu.memory_space<vmem>>
    tpu.wait_dma2 semaphore(%arg10 : memref<!tpu.dma_semaphore, #tpu.memory_space<semaphore_mem>>) src(%296 : memref<1x384xf32, #tpu.memory_space<any>>) dst(%297 : memref<1x384xf32, #tpu.memory_space<vmem>>)
    %c6_i32_170 = arith.constant 6 : i32
    %298 = arith.addi %0, %c6_i32_170 : i32
    %299 = arith.index_cast %298 : i32 to index
    %300 = memref.load %arg1[%299] : memref<24xi32, #tpu.memory_space<smem>>
    %c0_i32_171 = arith.constant 0 : i32
    %301 = tpu.memref_slice %arg5[%300, %c0_i32_171] : memref<384x384xf32, #tpu.memory_space<any>> -> memref<1x384xf32, #tpu.memory_space<any>>
    %c6_i32_172 = arith.constant 6 : i32
    %c0_i32_173 = arith.constant 0 : i32
    %302 = tpu.memref_slice %arg9[%c6_i32_172, %c0_i32_173] : memref<24x384xf32, #tpu.memory_space<vmem>> -> memref<1x384xf32, #tpu.memory_space<vmem>>
    tpu.wait_dma2 semaphore(%arg10 : memref<!tpu.dma_semaphore, #tpu.memory_space<semaphore_mem>>) src(%301 : memref<1x384xf32, #tpu.memory_space<any>>) dst(%302 : memref<1x384xf32, #tpu.memory_space<vmem>>)
    %c7_i32_174 = arith.constant 7 : i32
    %303 = arith.addi %0, %c7_i32_174 : i32
    %304 = arith.index_cast %303 : i32 to index
    %305 = memref.load %arg1[%304] : memref<24xi32, #tpu.memory_space<smem>>
    %c0_i32_175 = arith.constant 0 : i32
    %306 = tpu.memref_slice %arg5[%305, %c0_i32_175] : memref<384x384xf32, #tpu.memory_space<any>> -> memref<1x384xf32, #tpu.memory_space<any>>
    %c7_i32_176 = arith.constant 7 : i32
    %c0_i32_177 = arith.constant 0 : i32
    %307 = tpu.memref_slice %arg9[%c7_i32_176, %c0_i32_177] : memref<24x384xf32, #tpu.memory_space<vmem>> -> memref<1x384xf32, #tpu.memory_space<vmem>>
    tpu.wait_dma2 semaphore(%arg10 : memref<!tpu.dma_semaphore, #tpu.memory_space<semaphore_mem>>) src(%306 : memref<1x384xf32, #tpu.memory_space<any>>) dst(%307 : memref<1x384xf32, #tpu.memory_space<vmem>>)
    %c8_i32_178 = arith.constant 8 : i32
    %308 = arith.addi %0, %c8_i32_178 : i32
    %309 = arith.index_cast %308 : i32 to index
    %310 = memref.load %arg1[%309] : memref<24xi32, #tpu.memory_space<smem>>
    %c0_i32_179 = arith.constant 0 : i32
    %311 = tpu.memref_slice %arg5[%310, %c0_i32_179] : memref<384x384xf32, #tpu.memory_space<any>> -> memref<1x384xf32, #tpu.memory_space<any>>
    %c8_i32_180 = arith.constant 8 : i32
    %c0_i32_181 = arith.constant 0 : i32
    %312 = tpu.memref_slice %arg9[%c8_i32_180, %c0_i32_181] : memref<24x384xf32, #tpu.memory_space<vmem>> -> memref<1x384xf32, #tpu.memory_space<vmem>>
    tpu.wait_dma2 semaphore(%arg10 : memref<!tpu.dma_semaphore, #tpu.memory_space<semaphore_mem>>) src(%311 : memref<1x384xf32, #tpu.memory_space<any>>) dst(%312 : memref<1x384xf32, #tpu.memory_space<vmem>>)
    %c9_i32_182 = arith.constant 9 : i32
    %313 = arith.addi %0, %c9_i32_182 : i32
    %314 = arith.index_cast %313 : i32 to index
    %315 = memref.load %arg1[%314] : memref<24xi32, #tpu.memory_space<smem>>
    %c0_i32_183 = arith.constant 0 : i32
    %316 = tpu.memref_slice %arg5[%315, %c0_i32_183] : memref<384x384xf32, #tpu.memory_space<any>> -> memref<1x384xf32, #tpu.memory_space<any>>
    %c9_i32_184 = arith.constant 9 : i32
    %c0_i32_185 = arith.constant 0 : i32
    %317 = tpu.memref_slice %arg9[%c9_i32_184, %c0_i32_185] : memref<24x384xf32, #tpu.memory_space<vmem>> -> memref<1x384xf32, #tpu.memory_space<vmem>>
    tpu.wait_dma2 semaphore(%arg10 : memref<!tpu.dma_semaphore, #tpu.memory_space<semaphore_mem>>) src(%316 : memref<1x384xf32, #tpu.memory_space<any>>) dst(%317 : memref<1x384xf32, #tpu.memory_space<vmem>>)
    %c10_i32_186 = arith.constant 10 : i32
    %318 = arith.addi %0, %c10_i32_186 : i32
    %319 = arith.index_cast %318 : i32 to index
    %320 = memref.load %arg1[%319] : memref<24xi32, #tpu.memory_space<smem>>
    %c0_i32_187 = arith.constant 0 : i32
    %321 = tpu.memref_slice %arg5[%320, %c0_i32_187] : memref<384x384xf32, #tpu.memory_space<any>> -> memref<1x384xf32, #tpu.memory_space<any>>
    %c10_i32_188 = arith.constant 10 : i32
    %c0_i32_189 = arith.constant 0 : i32
    %322 = tpu.memref_slice %arg9[%c10_i32_188, %c0_i32_189] : memref<24x384xf32, #tpu.memory_space<vmem>> -> memref<1x384xf32, #tpu.memory_space<vmem>>
    tpu.wait_dma2 semaphore(%arg10 : memref<!tpu.dma_semaphore, #tpu.memory_space<semaphore_mem>>) src(%321 : memref<1x384xf32, #tpu.memory_space<any>>) dst(%322 : memref<1x384xf32, #tpu.memory_space<vmem>>)
    %c11_i32_190 = arith.constant 11 : i32
    %323 = arith.addi %0, %c11_i32_190 : i32
    %324 = arith.index_cast %323 : i32 to index
    %325 = memref.load %arg1[%324] : memref<24xi32, #tpu.memory_space<smem>>
    %c0_i32_191 = arith.constant 0 : i32
    %326 = tpu.memref_slice %arg5[%325, %c0_i32_191] : memref<384x384xf32, #tpu.memory_space<any>> -> memref<1x384xf32, #tpu.memory_space<any>>
    %c11_i32_192 = arith.constant 11 : i32
    %c0_i32_193 = arith.constant 0 : i32
    %327 = tpu.memref_slice %arg9[%c11_i32_192, %c0_i32_193] : memref<24x384xf32, #tpu.memory_space<vmem>> -> memref<1x384xf32, #tpu.memory_space<vmem>>
    tpu.wait_dma2 semaphore(%arg10 : memref<!tpu.dma_semaphore, #tpu.memory_space<semaphore_mem>>) src(%326 : memref<1x384xf32, #tpu.memory_space<any>>) dst(%327 : memref<1x384xf32, #tpu.memory_space<vmem>>)
    %c12_i32_194 = arith.constant 12 : i32
    %328 = arith.addi %0, %c12_i32_194 : i32
    %329 = arith.index_cast %328 : i32 to index
    %330 = memref.load %arg1[%329] : memref<24xi32, #tpu.memory_space<smem>>
    %c0_i32_195 = arith.constant 0 : i32
    %331 = tpu.memref_slice %arg5[%330, %c0_i32_195] : memref<384x384xf32, #tpu.memory_space<any>> -> memref<1x384xf32, #tpu.memory_space<any>>
    %c12_i32_196 = arith.constant 12 : i32
    %c0_i32_197 = arith.constant 0 : i32
    %332 = tpu.memref_slice %arg9[%c12_i32_196, %c0_i32_197] : memref<24x384xf32, #tpu.memory_space<vmem>> -> memref<1x384xf32, #tpu.memory_space<vmem>>
    tpu.wait_dma2 semaphore(%arg10 : memref<!tpu.dma_semaphore, #tpu.memory_space<semaphore_mem>>) src(%331 : memref<1x384xf32, #tpu.memory_space<any>>) dst(%332 : memref<1x384xf32, #tpu.memory_space<vmem>>)
    %c13_i32_198 = arith.constant 13 : i32
    %333 = arith.addi %0, %c13_i32_198 : i32
    %334 = arith.index_cast %333 : i32 to index
    %335 = memref.load %arg1[%334] : memref<24xi32, #tpu.memory_space<smem>>
    %c0_i32_199 = arith.constant 0 : i32
    %336 = tpu.memref_slice %arg5[%335, %c0_i32_199] : memref<384x384xf32, #tpu.memory_space<any>> -> memref<1x384xf32, #tpu.memory_space<any>>
    %c13_i32_200 = arith.constant 13 : i32
    %c0_i32_201 = arith.constant 0 : i32
    %337 = tpu.memref_slice %arg9[%c13_i32_200, %c0_i32_201] : memref<24x384xf32, #tpu.memory_space<vmem>> -> memref<1x384xf32, #tpu.memory_space<vmem>>
    tpu.wait_dma2 semaphore(%arg10 : memref<!tpu.dma_semaphore, #tpu.memory_space<semaphore_mem>>) src(%336 : memref<1x384xf32, #tpu.memory_space<any>>) dst(%337 : memref<1x384xf32, #tpu.memory_space<vmem>>)
    %c14_i32_202 = arith.constant 14 : i32
    %338 = arith.addi %0, %c14_i32_202 : i32
    %339 = arith.index_cast %338 : i32 to index
    %340 = memref.load %arg1[%339] : memref<24xi32, #tpu.memory_space<smem>>
    %c0_i32_203 = arith.constant 0 : i32
    %341 = tpu.memref_slice %arg5[%340, %c0_i32_203] : memref<384x384xf32, #tpu.memory_space<any>> -> memref<1x384xf32, #tpu.memory_space<any>>
    %c14_i32_204 = arith.constant 14 : i32
    %c0_i32_205 = arith.constant 0 : i32
    %342 = tpu.memref_slice %arg9[%c14_i32_204, %c0_i32_205] : memref<24x384xf32, #tpu.memory_space<vmem>> -> memref<1x384xf32, #tpu.memory_space<vmem>>
    tpu.wait_dma2 semaphore(%arg10 : memref<!tpu.dma_semaphore, #tpu.memory_space<semaphore_mem>>) src(%341 : memref<1x384xf32, #tpu.memory_space<any>>) dst(%342 : memref<1x384xf32, #tpu.memory_space<vmem>>)
    %c15_i32_206 = arith.constant 15 : i32
    %343 = arith.addi %0, %c15_i32_206 : i32
    %344 = arith.index_cast %343 : i32 to index
    %345 = memref.load %arg1[%344] : memref<24xi32, #tpu.memory_space<smem>>
    %c0_i32_207 = arith.constant 0 : i32
    %346 = tpu.memref_slice %arg5[%345, %c0_i32_207] : memref<384x384xf32, #tpu.memory_space<any>> -> memref<1x384xf32, #tpu.memory_space<any>>
    %c15_i32_208 = arith.constant 15 : i32
    %c0_i32_209 = arith.constant 0 : i32
    %347 = tpu.memref_slice %arg9[%c15_i32_208, %c0_i32_209] : memref<24x384xf32, #tpu.memory_space<vmem>> -> memref<1x384xf32, #tpu.memory_space<vmem>>
    tpu.wait_dma2 semaphore(%arg10 : memref<!tpu.dma_semaphore, #tpu.memory_space<semaphore_mem>>) src(%346 : memref<1x384xf32, #tpu.memory_space<any>>) dst(%347 : memref<1x384xf32, #tpu.memory_space<vmem>>)
    %c16_i32_210 = arith.constant 16 : i32
    %348 = arith.addi %0, %c16_i32_210 : i32
    %349 = arith.index_cast %348 : i32 to index
    %350 = memref.load %arg1[%349] : memref<24xi32, #tpu.memory_space<smem>>
    %c0_i32_211 = arith.constant 0 : i32
    %351 = tpu.memref_slice %arg5[%350, %c0_i32_211] : memref<384x384xf32, #tpu.memory_space<any>> -> memref<1x384xf32, #tpu.memory_space<any>>
    %c16_i32_212 = arith.constant 16 : i32
    %c0_i32_213 = arith.constant 0 : i32
    %352 = tpu.memref_slice %arg9[%c16_i32_212, %c0_i32_213] : memref<24x384xf32, #tpu.memory_space<vmem>> -> memref<1x384xf32, #tpu.memory_space<vmem>>
    tpu.wait_dma2 semaphore(%arg10 : memref<!tpu.dma_semaphore, #tpu.memory_space<semaphore_mem>>) src(%351 : memref<1x384xf32, #tpu.memory_space<any>>) dst(%352 : memref<1x384xf32, #tpu.memory_space<vmem>>)
    %c17_i32_214 = arith.constant 17 : i32
    %353 = arith.addi %0, %c17_i32_214 : i32
    %354 = arith.index_cast %353 : i32 to index
    %355 = memref.load %arg1[%354] : memref<24xi32, #tpu.memory_space<smem>>
    %c0_i32_215 = arith.constant 0 : i32
    %356 = tpu.memref_slice %arg5[%355, %c0_i32_215] : memref<384x384xf32, #tpu.memory_space<any>> -> memref<1x384xf32, #tpu.memory_space<any>>
    %c17_i32_216 = arith.constant 17 : i32
    %c0_i32_217 = arith.constant 0 : i32
    %357 = tpu.memref_slice %arg9[%c17_i32_216, %c0_i32_217] : memref<24x384xf32, #tpu.memory_space<vmem>> -> memref<1x384xf32, #tpu.memory_space<vmem>>
    tpu.wait_dma2 semaphore(%arg10 : memref<!tpu.dma_semaphore, #tpu.memory_space<semaphore_mem>>) src(%356 : memref<1x384xf32, #tpu.memory_space<any>>) dst(%357 : memref<1x384xf32, #tpu.memory_space<vmem>>)
    %c18_i32_218 = arith.constant 18 : i32
    %358 = arith.addi %0, %c18_i32_218 : i32
    %359 = arith.index_cast %358 : i32 to index
    %360 = memref.load %arg1[%359] : memref<24xi32, #tpu.memory_space<smem>>
    %c0_i32_219 = arith.constant 0 : i32
    %361 = tpu.memref_slice %arg5[%360, %c0_i32_219] : memref<384x384xf32, #tpu.memory_space<any>> -> memref<1x384xf32, #tpu.memory_space<any>>
    %c18_i32_220 = arith.constant 18 : i32
    %c0_i32_221 = arith.constant 0 : i32
    %362 = tpu.memref_slice %arg9[%c18_i32_220, %c0_i32_221] : memref<24x384xf32, #tpu.memory_space<vmem>> -> memref<1x384xf32, #tpu.memory_space<vmem>>
    tpu.wait_dma2 semaphore(%arg10 : memref<!tpu.dma_semaphore, #tpu.memory_space<semaphore_mem>>) src(%361 : memref<1x384xf32, #tpu.memory_space<any>>) dst(%362 : memref<1x384xf32, #tpu.memory_space<vmem>>)
    %c19_i32_222 = arith.constant 19 : i32
    %363 = arith.addi %0, %c19_i32_222 : i32
    %364 = arith.index_cast %363 : i32 to index
    %365 = memref.load %arg1[%364] : memref<24xi32, #tpu.memory_space<smem>>
    %c0_i32_223 = arith.constant 0 : i32
    %366 = tpu.memref_slice %arg5[%365, %c0_i32_223] : memref<384x384xf32, #tpu.memory_space<any>> -> memref<1x384xf32, #tpu.memory_space<any>>
    %c19_i32_224 = arith.constant 19 : i32
    %c0_i32_225 = arith.constant 0 : i32
    %367 = tpu.memref_slice %arg9[%c19_i32_224, %c0_i32_225] : memref<24x384xf32, #tpu.memory_space<vmem>> -> memref<1x384xf32, #tpu.memory_space<vmem>>
    tpu.wait_dma2 semaphore(%arg10 : memref<!tpu.dma_semaphore, #tpu.memory_space<semaphore_mem>>) src(%366 : memref<1x384xf32, #tpu.memory_space<any>>) dst(%367 : memref<1x384xf32, #tpu.memory_space<vmem>>)
    %c20_i32_226 = arith.constant 20 : i32
    %368 = arith.addi %0, %c20_i32_226 : i32
    %369 = arith.index_cast %368 : i32 to index
    %370 = memref.load %arg1[%369] : memref<24xi32, #tpu.memory_space<smem>>
    %c0_i32_227 = arith.constant 0 : i32
    %371 = tpu.memref_slice %arg5[%370, %c0_i32_227] : memref<384x384xf32, #tpu.memory_space<any>> -> memref<1x384xf32, #tpu.memory_space<any>>
    %c20_i32_228 = arith.constant 20 : i32
    %c0_i32_229 = arith.constant 0 : i32
    %372 = tpu.memref_slice %arg9[%c20_i32_228, %c0_i32_229] : memref<24x384xf32, #tpu.memory_space<vmem>> -> memref<1x384xf32, #tpu.memory_space<vmem>>
    tpu.wait_dma2 semaphore(%arg10 : memref<!tpu.dma_semaphore, #tpu.memory_space<semaphore_mem>>) src(%371 : memref<1x384xf32, #tpu.memory_space<any>>) dst(%372 : memref<1x384xf32, #tpu.memory_space<vmem>>)
    %c21_i32_230 = arith.constant 21 : i32
    %373 = arith.addi %0, %c21_i32_230 : i32
    %374 = arith.index_cast %373 : i32 to index
    %375 = memref.load %arg1[%374] : memref<24xi32, #tpu.memory_space<smem>>
    %c0_i32_231 = arith.constant 0 : i32
    %376 = tpu.memref_slice %arg5[%375, %c0_i32_231] : memref<384x384xf32, #tpu.memory_space<any>> -> memref<1x384xf32, #tpu.memory_space<any>>
    %c21_i32_232 = arith.constant 21 : i32
    %c0_i32_233 = arith.constant 0 : i32
    %377 = tpu.memref_slice %arg9[%c21_i32_232, %c0_i32_233] : memref<24x384xf32, #tpu.memory_space<vmem>> -> memref<1x384xf32, #tpu.memory_space<vmem>>
    tpu.wait_dma2 semaphore(%arg10 : memref<!tpu.dma_semaphore, #tpu.memory_space<semaphore_mem>>) src(%376 : memref<1x384xf32, #tpu.memory_space<any>>) dst(%377 : memref<1x384xf32, #tpu.memory_space<vmem>>)
    %c22_i32_234 = arith.constant 22 : i32
    %378 = arith.addi %0, %c22_i32_234 : i32
    %379 = arith.index_cast %378 : i32 to index
    %380 = memref.load %arg1[%379] : memref<24xi32, #tpu.memory_space<smem>>
    %c0_i32_235 = arith.constant 0 : i32
    %381 = tpu.memref_slice %arg5[%380, %c0_i32_235] : memref<384x384xf32, #tpu.memory_space<any>> -> memref<1x384xf32, #tpu.memory_space<any>>
    %c22_i32_236 = arith.constant 22 : i32
    %c0_i32_237 = arith.constant 0 : i32
    %382 = tpu.memref_slice %arg9[%c22_i32_236, %c0_i32_237] : memref<24x384xf32, #tpu.memory_space<vmem>> -> memref<1x384xf32, #tpu.memory_space<vmem>>
    tpu.wait_dma2 semaphore(%arg10 : memref<!tpu.dma_semaphore, #tpu.memory_space<semaphore_mem>>) src(%381 : memref<1x384xf32, #tpu.memory_space<any>>) dst(%382 : memref<1x384xf32, #tpu.memory_space<vmem>>)
    %c23_i32_238 = arith.constant 23 : i32
    %383 = arith.addi %0, %c23_i32_238 : i32
    %384 = arith.index_cast %383 : i32 to index
    %385 = memref.load %arg1[%384] : memref<24xi32, #tpu.memory_space<smem>>
    %c0_i32_239 = arith.constant 0 : i32
    %386 = tpu.memref_slice %arg5[%385, %c0_i32_239] : memref<384x384xf32, #tpu.memory_space<any>> -> memref<1x384xf32, #tpu.memory_space<any>>
    %c23_i32_240 = arith.constant 23 : i32
    %c0_i32_241 = arith.constant 0 : i32
    %387 = tpu.memref_slice %arg9[%c23_i32_240, %c0_i32_241] : memref<24x384xf32, #tpu.memory_space<vmem>> -> memref<1x384xf32, #tpu.memory_space<vmem>>
    tpu.wait_dma2 semaphore(%arg10 : memref<!tpu.dma_semaphore, #tpu.memory_space<semaphore_mem>>) src(%386 : memref<1x384xf32, #tpu.memory_space<any>>) dst(%387 : memref<1x384xf32, #tpu.memory_space<vmem>>)
    %c0_242 = arith.constant 0 : index
    %c0_243 = arith.constant 0 : index
    %388 = vector.load %arg9[%c0_242, %c0_243] : memref<24x384xf32, #tpu.memory_space<vmem>>, vector<24x384xf32>
    %c0_244 = arith.constant 0 : index
    %c0_245 = arith.constant 0 : index
    %389 = vector.load %arg8[%c0_244, %c0_245] : memref<384x128xf32, #tpu.memory_space<vmem>>, vector<384x128xf32>
    %cst = arith.constant dense<0.000000e+00> : vector<24x128xf32>
    %390 = tpu.matmul %388, %389, %cst {dimension_numbers = #tpu.dot_dimension_numbers<[1], [0], [0], [1], [0, 0, 1, 1], [], []>} : vector<24x384xf32>, vector<384x128xf32>, vector<24x128xf32> -> vector<24x128xf32>
    %c0_246 = arith.constant 0 : index
    %c0_247 = arith.constant 0 : index
    %391 = vector.load %arg6[%c0_246, %c0_247] : memref<24x128xf32, #tpu.memory_space<vmem>>, vector<24x128xf32>
    %392 = arith.addf %391, %390 : vector<24x128xf32>
    %c0_248 = arith.constant 0 : index
    %c0_249 = arith.constant 0 : index
    %393 = vector.load %arg4[%c0_248, %c0_249] : memref<1x128xf32, #tpu.memory_space<vmem>>, vector<1x128xf32>
    %394 = vector.broadcast %393 : vector<1x128xf32> to vector<24x128xf32>
    %395 = arith.addf %392, %394 : vector<24x128xf32>
    %cst_250 = arith.constant 0.000000e+00 : f32
    %396 = vector.broadcast %cst_250 : f32 to vector<24x128xf32>
    %397 = arith.cmpf ogt, %395, %396 : vector<24x128xf32>
    %cst_251 = arith.constant 0.00999999977 : f32
    %398 = vector.broadcast %cst_251 : f32 to vector<24x128xf32>
    %399 = arith.mulf %398, %395 : vector<24x128xf32>
    %400 = arith.select %397, %395, %399 : vector<24x128xi1>, vector<24x128xf32>
    %c0_252 = arith.constant 0 : index
    %c0_253 = arith.constant 0 : index
    %401 = vector.load %arg6[%c0_252, %c0_253] : memref<24x128xf32, #tpu.memory_space<vmem>>, vector<24x128xf32>
    tpu.vector_store %arg6[%c0_252, %c0_253], %400 {strides = array<i32>} : memref<24x128xf32, #tpu.memory_space<vmem>>, vector<24x128xf32>,
    return
  }
  func.func @transform_0(%arg0: i32, %arg1: memref<24xi32, #tpu.memory_space<smem>>) -> (i32, i32) {
    %c0_i32 = arith.constant 0 : i32
    %c0_i32_0 = arith.constant 0 : i32
    %c0_i32_1 = arith.constant 0 : i32
    return %c0_i32, %c0_i32_0 : i32, i32
  }
  func.func @transform_1(%arg0: i32, %arg1: memref<24xi32, #tpu.memory_space<smem>>) -> (i32, i32) {
    %c0_i32 = arith.constant 0 : i32
    %c0_i32_0 = arith.constant 0 : i32
    %c0_i32_1 = arith.constant 0 : i32
    return %c0_i32, %c0_i32_0 : i32, i32
  }
  func.func @transform_2(%arg0: i32, %arg1: memref<24xi32, #tpu.memory_space<smem>>) -> (i32, i32) {
    %c0_i32 = arith.constant 0 : i32
    %c0_i32_0 = arith.constant 0 : i32
    %c0_i32_1 = arith.constant 0 : i32
    return %c0_i32, %c0_i32_0 : i32, i32
  }
  func.func @transform_4(%arg0: i32, %arg1: memref<24xi32, #tpu.memory_space<smem>>) -> (i32, i32) {
    %c0_i32 = arith.constant 0 : i32
    %c0_i32_0 = arith.constant 0 : i32
    return %arg0, %c0_i32 : i32, i32
  }
}

</mosaic_0001>

<llo_original>
// kernel: tpu_custom_call.1
$region0: #{tpu_custom_call.1}
  #allocation0 [shape = 'u32[]', space=smem, size = 0x4, offset = 0x4, fixed_abs, tag = 'smem constant byte address 0x4 - core index']
  #allocation1 [shape = 'u32[72,128]{1,0:T(1,128)}', space=vmem, size = 0x9000, scoped, tag = 'internal scratch']
  #allocation2 [shape = 'f32[384,128]{1,0:T(8,128)}', space=vmem, size = 0x30000, scoped, tag = 'scratch operand']
  #allocation3 [shape = 'f32[384,128]{1,0:T(8,128)}', space=vmem, size = 0x30000, scoped, tag = 'scratch operand']
  #allocation4 [shape = 'f32[24,384]{1,0:T(8,128)}', space=vmem, size = 0x9000, scoped, tag = 'scratch operand']
  #allocation5 [shape = 's32[1]{0}', space=sflag, size = 0x4, scoped, tag = 'scratch operand']
  #allocation6 [shape = 's32[1]{0}', space=sflag, size = 0x4, scoped, tag = 'scoped memory for tpu_custom_call.1']
  #allocation7 [shape = 'u8[512]{0}', space=smem, size = 0x200, scoped, tag = 'prefetched SMEM operand 0']
  #allocation14 [shape = 's32[]', space=sflag, size = 0x4, offset = 0, fixed_abs, tag = 'sflag constant byte address 0x0 - dummy sync flag']
  #allocation15 [shape = 's32[]', space=sflag, size = 0x4, offset = 0, fixed_abs, tag = 'sflag constant byte address 0x0 - dummy sync flag']
  #allocation16 [shape = 's32[]', space=sflag, size = 0x4, offset = 0, fixed_abs, tag = 'sflag constant byte address 0x0 - dummy sync flag']
  #allocation17 [shape = 's32[]', space=sflag, size = 0x4, offset = 0, fixed_abs, tag = 'sflag constant byte address 0x0 - dummy sync flag']
  #allocation18 [shape = 's32[]', space=sflag, size = 0x4, offset = 0, fixed_abs, tag = 'sflag constant byte address 0x0 - dummy sync flag']
  #allocation19 [shape = 's32[]', space=sflag, size = 0x4, offset = 0, fixed_abs, tag = 'sflag constant byte address 0x0 - dummy sync flag']
  #allocation20 [shape = 's32[]', space=sflag, size = 0x4, offset = 0, fixed_abs, tag = 'sflag constant byte address 0x0 - dummy sync flag']
  #allocation21 [shape = 's32[]', space=sflag, size = 0x4, offset = 0, fixed_abs, tag = 'sflag constant byte address 0x0 - dummy sync flag']
  #allocation22 [shape = 's32[]', space=sflag, size = 0x4, offset = 0, fixed_abs, tag = 'sflag constant byte address 0x0 - dummy sync flag']
  #allocation23 [shape = 's32[]', space=sflag, size = 0x4, offset = 0, fixed_abs, tag = 'sflag constant byte address 0x0 - dummy sync flag']
  #allocation24 [shape = 's32[]', space=sflag, size = 0x4, offset = 0, fixed_abs, tag = 'sflag constant byte address 0x0 - dummy sync flag']
  #allocation25 [shape = 's32[]', space=sflag, size = 0x4, offset = 0, fixed_abs, tag = 'sflag constant byte address 0x0 - dummy sync flag']
  #allocation26 [shape = 's32[]', space=sflag, size = 0x4, offset = 0, fixed_abs, tag = 'sflag constant byte address 0x0 - dummy sync flag']
  #allocation27 [shape = 's32[]', space=sflag, size = 0x4, offset = 0, fixed_abs, tag = 'sflag constant byte address 0x0 - dummy sync flag']
  #allocation28 [shape = 's32[]', space=sflag, size = 0x4, offset = 0, fixed_abs, tag = 'sflag constant byte address 0x0 - dummy sync flag']
  #allocation29 [shape = 's32[]', space=sflag, size = 0x4, offset = 0, fixed_abs, tag = 'sflag constant byte address 0x0 - dummy sync flag']
  #allocation30 [shape = 's32[]', space=sflag, size = 0x4, offset = 0, fixed_abs, tag = 'sflag constant byte address 0x0 - dummy sync flag']
  #allocation31 [shape = 's32[]', space=sflag, size = 0x4, offset = 0, fixed_abs, tag = 'sflag constant byte address 0x0 - dummy sync flag']
  #allocation32 [shape = 's32[]', space=sflag, size = 0x4, offset = 0, fixed_abs, tag = 'sflag constant byte address 0x0 - dummy sync flag']
  #allocation33 [shape = 's32[]', space=sflag, size = 0x4, offset = 0, fixed_abs, tag = 'sflag constant byte address 0x0 - dummy sync flag']
  #allocation34 [shape = 's32[]', space=sflag, size = 0x4, offset = 0, fixed_abs, tag = 'sflag constant byte address 0x0 - dummy sync flag']
  #allocation35 [shape = 's32[]', space=sflag, size = 0x4, offset = 0, fixed_abs, tag = 'sflag constant byte address 0x0 - dummy sync flag']
  #allocation36 [shape = 's32[]', space=sflag, size = 0x4, offset = 0, fixed_abs, tag = 'sflag constant byte address 0x0 - dummy sync flag']
  #allocation37 [shape = 's32[]', space=sflag, size = 0x4, offset = 0, fixed_abs, tag = 'sflag constant byte address 0x0 - dummy sync flag']
  %s0 = inlined_call_operand.hbm [shape: s32[24], index: 0, kind: input, shape index: {}]
  %s1 = inlined_call_operand.hbm [shape: bf16[384,128], index: 1, kind: input, shape index: {}]
  %s2 = inlined_call_operand.hbm [shape: bf16[128,256], index: 2, kind: input, shape index: {}]
  %s3 = inlined_call_operand.vmem [shape: f32[1,128], index: 3, kind: input, shape index: {}]
  %s4 = inlined_call_operand.hbm [shape: f32[384,384], index: 4, kind: input, shape index: {}]
  %s5 = inlined_call_operand.hbm [shape: f32[24,128], index: 5, kind: output, shape index: {}]
  %s6 = sld [smem:[#allocation0]]
  $region34: #{tpu_custom_call.1} parent=0
    _
  %s8 = ssub.s32 1, %s6
  %s9 = scalar_select 0, %s8, %s6
  %s11 = sshll.u32 %s0, 4
  %s12 = int_to_ptr.hbm [resolvable:$true] %s11
  %14 = dma.hbm_to_smem %s12, 16, [#allocation7], [#allocation6]
  %16 = dma.done [#allocation6], 16
  %17 = sfence
  $region1: #{tpu_custom_call.1} parent=0
    #allocation8 [shape = 'u8[98304]{0}', space=vmem, size = 0x18000, scoped, tag = 'input window, operand 1, single buffered']
    #allocation9 [shape = 's32[1]{0}', space=sflag, size = 0x4, scoped, tag = 'scoped memory for tpu_custom_call.1']
    #allocation10 [shape = 's32[1]{0}', space=sflag, size = 0x4, scoped, tag = 'scoped memory for tpu_custom_call.1']
    #allocation11 [shape = 'u8[65536]{0}', space=vmem, size = 0x10000, scoped, tag = 'input window, operand 2, single buffered']
    #allocation12 [shape = 's32[1]{0}', space=sflag, size = 0x4, scoped, tag = 'scoped memory for tpu_custom_call.1']
    #allocation13 [shape = 'u8[12288]{0}', space=vmem, size = 0x3000, scoped, tag = 'output window, operand 0, single buffered']
    %18 = vsyncpa [#allocation9], 0
    %19 = vsyncpa [#allocation12], 0
    %20 = vsyncpa [#allocation10], 0
    // Predicated region
    $region2: #{tpu_custom_call.1} parent=1 // pred_check
      _
    $region3: #{tpu_custom_call.1} parent=1 // pred_check_branch
      %22 = sbr.rel (0) target = $region5
    $region4: #{tpu_custom_call.1} parent=1 // pred_region
      %24 = vsyncadd [#allocation9], 0
      %s25 = sshll.u32 %s1, 4
      %s26 = int_to_ptr.hbm [resolvable:$true] %s25
      %s27 = sshll.u32 [#allocation8], 4
      %s28 = int_to_ptr.vmem [resolvable:$true] %s27
      %33 = dma.hbm_to_vmem [thread:$0]  %s26, 3072, %s28, [#allocation9], 64, 64, 4
    $region5: #{tpu_custom_call.1} parent=1 // pred_fallthru
      _
    // Predicated region
    $region6: #{tpu_custom_call.1} parent=1 // pred_check
      _
    $region7: #{tpu_custom_call.1} parent=1 // pred_check_branch
      %35 = sbr.rel (0) target = $region9
    $region8: #{tpu_custom_call.1} parent=1 // pred_region
      %37 = vsyncadd [#allocation12], 0
      %s38 = sshll.u32 %s2, 4
      %s39 = int_to_ptr.hbm [resolvable:$true] %s38
      %s40 = sshll.u32 [#allocation11], 4
      %s41 = int_to_ptr.vmem [resolvable:$true] %s40
      %46 = dma.hbm_to_vmem [thread:$0]  %s39, 2048, %s41, [#allocation12], 128, 128, 8
    $region9: #{tpu_custom_call.1} parent=1 // pred_fallthru
      _
    // Predicated region
    $region10: #{tpu_custom_call.1} parent=1 // pred_check
      _
    $region11: #{tpu_custom_call.1} parent=1 // pred_check_branch
      %48 = sbr.rel (0) target = $region13
    $region12: #{tpu_custom_call.1} parent=1 // pred_region
      _
    $region13: #{tpu_custom_call.1} parent=1 // pred_fallthru
      _
    // Predicated region
    $region14: #{tpu_custom_call.1} parent=1 // pred_check
      _
    $region15: #{tpu_custom_call.1} parent=1 // pred_check_branch
      %50 = sbr.rel (0) target = $region17
    $region16: #{tpu_custom_call.1} parent=1 // pred_region
      %52 = dma.done [#allocation9], 3072
    $region17: #{tpu_custom_call.1} parent=1 // pred_fallthru
      _
    // Predicated region
    $region18: #{tpu_custom_call.1} parent=1 // pred_check
      _
    $region19: #{tpu_custom_call.1} parent=1 // pred_check_branch
      %54 = sbr.rel (0) target = $region21
    $region20: #{tpu_custom_call.1} parent=1 // pred_region
      %56 = dma.done [#allocation12], 2048
    $region21: #{tpu_custom_call.1} parent=1 // pred_fallthru
      _
    %s57 = smul.u32 0, 24
    %s58 = sld [smem:[#allocation7 + %s57]]
    %s59 = sshrl.u32 %s58, 3
    %s60 = sand.u32 %s58, 7
    %s61 = smul.u32 %s59, 24
    %s62 = sadd.s32 %s60, %s61
    %s63 = scalar_lea.hbm %s4, %s62
    %s64 = sshll.u32 %s63, 4
    %s65 = int_to_ptr.hbm [resolvable:$true] %s64
    %s66 = sshll.u32 [#allocation4], 4
    %s67 = int_to_ptr.vmem [resolvable:$true] %s66
    %71 = dma.hbm_to_vmem [thread:$0]  %s65, 48, %s67, [#allocation5], 128, 128, 1
    %s72 = sadd.s32 %s57, 1
    %s73 = sld [smem:[#allocation7 + %s72]]
    %s74 = sshrl.u32 %s73, 3
    %s75 = sand.u32 %s73, 7
    %s76 = smul.u32 %s74, 24
    %s77 = sadd.s32 %s75, %s76
    %s78 = scalar_lea.hbm %s4, %s77
    %s79 = scalar_lea.vmem [#allocation4], 1
    %s80 = sshll.u32 %s78, 4
    %s81 = int_to_ptr.hbm [resolvable:$true] %s80
    %s82 = sshll.u32 %s79, 4
    %s83 = int_to_ptr.vmem [resolvable:$true] %s82
    %87 = dma.hbm_to_vmem [thread:$0]  %s81, 48, %s83, [#allocation5], 128, 128, 1
    %s88 = sadd.s32 %s57, 2
    %s89 = sld [smem:[#allocation7 + %s88]]
    %s90 = sshrl.u32 %s89, 3
    %s91 = sand.u32 %s89, 7
    %s92 = smul.u32 %s90, 24
    %s93 = sadd.s32 %s91, %s92
    %s94 = scalar_lea.hbm %s4, %s93
    %s95 = scalar_lea.vmem [#allocation4], 2
    %s96 = sshll.u32 %s94, 4
    %s97 = int_to_ptr.hbm [resolvable:$true] %s96
    %s98 = sshll.u32 %s95, 4
    %s99 = int_to_ptr.vmem [resolvable:$true] %s98
    %103 = dma.hbm_to_vmem [thread:$0]  %s97, 48, %s99, [#allocation5], 128, 128, 1
    %s104 = sadd.s32 %s57, 3
    %s105 = sld [smem:[#allocation7 + %s104]]
    %s106 = sshrl.u32 %s105, 3
    %s107 = sand.u32 %s105, 7
    %s108 = smul.u32 %s106, 24
    %s109 = sadd.s32 %s107, %s108
    %s110 = scalar_lea.hbm %s4, %s109
    %s111 = scalar_lea.vmem [#allocation4], 3
    %s112 = sshll.u32 %s110, 4
    %s113 = int_to_ptr.hbm [resolvable:$true] %s112
    %s114 = sshll.u32 %s111, 4
    %s115 = int_to_ptr.vmem [resolvable:$true] %s114
    %119 = dma.hbm_to_vmem [thread:$0]  %s113, 48, %s115, [#allocation5], 128, 128, 1
    %s120 = sadd.s32 %s57, 4
    %s121 = sld [smem:[#allocation7 + %s120]]
    %s122 = sshrl.u32 %s121, 3
    %s123 = sand.u32 %s121, 7
    %s124 = smul.u32 %s122, 24
    %s125 = sadd.s32 %s123, %s124
    %s126 = scalar_lea.hbm %s4, %s125
    %s127 = scalar_lea.vmem [#allocation4], 4
    %s128 = sshll.u32 %s126, 4
    %s129 = int_to_ptr.hbm [resolvable:$true] %s128
    %s130 = sshll.u32 %s127, 4
    %s131 = int_to_ptr.vmem [resolvable:$true] %s130
    %135 = dma.hbm_to_vmem [thread:$0]  %s129, 48, %s131, [#allocation5], 128, 128, 1
    %s136 = sadd.s32 %s57, 5
    %s137 = sld [smem:[#allocation7 + %s136]]
    %s138 = sshrl.u32 %s137, 3
    %s139 = sand.u32 %s137, 7
    %s140 = smul.u32 %s138, 24
    %s141 = sadd.s32 %s139, %s140
    %s142 = scalar_lea.hbm %s4, %s141
    %s143 = scalar_lea.vmem [#allocation4], 5
    %s144 = sshll.u32 %s142, 4
    %s145 = int_to_ptr.hbm [resolvable:$true] %s144
    %s146 = sshll.u32 %s143, 4
    %s147 = int_to_ptr.vmem [resolvable:$true] %s146
    %151 = dma.hbm_to_vmem [thread:$0]  %s145, 48, %s147, [#allocation5], 128, 128, 1
    %s152 = sadd.s32 %s57, 6
    %s153 = sld [smem:[#allocation7 + %s152]]
    %s154 = sshrl.u32 %s153, 3
    %s155 = sand.u32 %s153, 7
    %s156 = smul.u32 %s154, 24
    %s157 = sadd.s32 %s155, %s156
    %s158 = scalar_lea.hbm %s4, %s157
    %s159 = scalar_lea.vmem [#allocation4], 6
    %s160 = sshll.u32 %s158, 4
    %s161 = int_to_ptr.hbm [resolvable:$true] %s160
    %s162 = sshll.u32 %s159, 4
    %s163 = int_to_ptr.vmem [resolvable:$true] %s162
    %167 = dma.hbm_to_vmem [thread:$0]  %s161, 48, %s163, [#allocation5], 128, 128, 1
    %s168 = sadd.s32 %s57, 7
    %s169 = sld [smem:[#allocation7 + %s168]]
    %s170 = sshrl.u32 %s169, 3
    %s171 = sand.u32 %s169, 7
    %s172 = smul.u32 %s170, 24
    %s173 = sadd.s32 %s171, %s172
    %s174 = scalar_lea.hbm %s4, %s173
    %s175 = scalar_lea.vmem [#allocation4], 7
    %s176 = sshll.u32 %s174, 4
    %s177 = int_to_ptr.hbm [resolvable:$true] %s176
    %s178 = sshll.u32 %s175, 4
    %s179 = int_to_ptr.vmem [resolvable:$true] %s178
    %183 = dma.hbm_to_vmem [thread:$0]  %s177, 48, %s179, [#allocation5], 128, 128, 1
    %s184 = sadd.s32 %s57, 8
    %s185 = sld [smem:[#allocation7 + %s184]]
    %s186 = sshrl.u32 %s185, 3
    %s187 = sand.u32 %s185, 7
    %s188 = smul.u32 %s186, 24
    %s189 = sadd.s32 %s187, %s188
    %s190 = scalar_lea.hbm %s4, %s189
    %s191 = scalar_lea.vmem [#allocation4], 24
    %s192 = sshll.u32 %s190, 4
    %s193 = int_to_ptr.hbm [resolvable:$true] %s192
    %s194 = sshll.u32 %s191, 4
    %s195 = int_to_ptr.vmem [resolvable:$true] %s194
    %199 = dma.hbm_to_vmem [thread:$0]  %s193, 48, %s195, [#allocation5], 128, 128, 1
    %s200 = sadd.s32 %s57, 9
    %s201 = sld [smem:[#allocation7 + %s200]]
    %s202 = sshrl.u32 %s201, 3
    %s203 = sand.u32 %s201, 7
    %s204 = smul.u32 %s202, 24
    %s205 = sadd.s32 %s203, %s204
    %s206 = scalar_lea.hbm %s4, %s205
    %s207 = scalar_lea.vmem [#allocation4], 25
    %s208 = sshll.u32 %s206, 4
    %s209 = int_to_ptr.hbm [resolvable:$true] %s208
    %s210 = sshll.u32 %s207, 4
    %s211 = int_to_ptr.vmem [resolvable:$true] %s210
    %215 = dma.hbm_to_vmem [thread:$0]  %s209, 48, %s211, [#allocation5], 128, 128, 1
    %s216 = sadd.s32 %s57, 10
    %s217 = sld [smem:[#allocation7 + %s216]]
    %s218 = sshrl.u32 %s217, 3
    %s219 = sand.u32 %s217, 7
    %s220 = smul.u32 %s218, 24
    %s221 = sadd.s32 %s219, %s220
    %s222 = scalar_lea.hbm %s4, %s221
    %s223 = scalar_lea.vmem [#allocation4], 26
    %s224 = sshll.u32 %s222, 4
    %s225 = int_to_ptr.hbm [resolvable:$true] %s224
    %s226 = sshll.u32 %s223, 4
    %s227 = int_to_ptr.vmem [resolvable:$true] %s226
    %231 = dma.hbm_to_vmem [thread:$0]  %s225, 48, %s227, [#allocation5], 128, 128, 1
    %s232 = sadd.s32 %s57, 11
    %s233 = sld [smem:[#allocation7 + %s232]]
    %s234 = sshrl.u32 %s233, 3
    %s235 = sand.u32 %s233, 7
    %s236 = smul.u32 %s234, 24
    %s237 = sadd.s32 %s235, %s236
    %s238 = scalar_lea.hbm %s4, %s237
    %s239 = scalar_lea.vmem [#allocation4], 27
    %s240 = sshll.u32 %s238, 4
    %s241 = int_to_ptr.hbm [resolvable:$true] %s240
    %s242 = sshll.u32 %s239, 4
    %s243 = int_to_ptr.vmem [resolvable:$true] %s242
    %247 = dma.hbm_to_vmem [thread:$0]  %s241, 48, %s243, [#allocation5], 128, 128, 1
    %s248 = sadd.s32 %s57, 12
    %s249 = sld [smem:[#allocation7 + %s248]]
    %s250 = sshrl.u32 %s249, 3
    %s251 = sand.u32 %s249, 7
    %s252 = smul.u32 %s250, 24
    %s253 = sadd.s32 %s251, %s252
    %s254 = scalar_lea.hbm %s4, %s253
    %s255 = scalar_lea.vmem [#allocation4], 28
    %s256 = sshll.u32 %s254, 4
    %s257 = int_to_ptr.hbm [resolvable:$true] %s256
    %s258 = sshll.u32 %s255, 4
    %s259 = int_to_ptr.vmem [resolvable:$true] %s258
    %263 = dma.hbm_to_vmem [thread:$0]  %s257, 48, %s259, [#allocation5], 128, 128, 1
    %s264 = sadd.s32 %s57, 13
    %s265 = sld [smem:[#allocation7 + %s264]]
    %s266 = sshrl.u32 %s265, 3
    %s267 = sand.u32 %s265, 7
    %s268 = smul.u32 %s266, 24
    %s269 = sadd.s32 %s267, %s268
    %s270 = scalar_lea.hbm %s4, %s269
    %s271 = scalar_lea.vmem [#allocation4], 29
    %s272 = sshll.u32 %s270, 4
    %s273 = int_to_ptr.hbm [resolvable:$true] %s272
    %s274 = sshll.u32 %s271, 4
    %s275 = int_to_ptr.vmem [resolvable:$true] %s274
    %279 = dma.hbm_to_vmem [thread:$0]  %s273, 48, %s275, [#allocation5], 128, 128, 1
    %s280 = sadd.s32 %s57, 14
    %s281 = sld [smem:[#allocation7 + %s280]]
    %s282 = sshrl.u32 %s281, 3
    %s283 = sand.u32 %s281, 7
    %s284 = smul.u32 %s282, 24
    %s285 = sadd.s32 %s283, %s284
    %s286 = scalar_lea.hbm %s4, %s285
    %s287 = scalar_lea.vmem [#allocation4], 30
    %s288 = sshll.u32 %s286, 4
    %s289 = int_to_ptr.hbm [resolvable:$true] %s288
    %s290 = sshll.u32 %s287, 4
    %s291 = int_to_ptr.vmem [resolvable:$true] %s290
    %295 = dma.hbm_to_vmem [thread:$0]  %s289, 48, %s291, [#allocation5], 128, 128, 1
    %s296 = sadd.s32 %s57, 15
    %s297 = sld [smem:[#allocation7 + %s296]]
    %s298 = sshrl.u32 %s297, 3
    %s299 = sand.u32 %s297, 7
    %s300 = smul.u32 %s298, 24
    %s301 = sadd.s32 %s299, %s300
    %s302 = scalar_lea.hbm %s4, %s301
    %s303 = scalar_lea.vmem [#allocation4], 31
    %s304 = sshll.u32 %s302, 4
    %s305 = int_to_ptr.hbm [resolvable:$true] %s304
    %s306 = sshll.u32 %s303, 4
    %s307 = int_to_ptr.vmem [resolvable:$true] %s306
    %311 = dma.hbm_to_vmem [thread:$0]  %s305, 48, %s307, [#allocation5], 128, 128, 1
    %s312 = sadd.s32 %s57, 16
    %s313 = sld [smem:[#allocation7 + %s312]]
    %s314 = sshrl.u32 %s313, 3
    %s315 = sand.u32 %s313, 7
    %s316 = smul.u32 %s314, 24
    %s317 = sadd.s32 %s315, %s316
    %s318 = scalar_lea.hbm %s4, %s317
    %s319 = scalar_lea.vmem [#allocation4], 48
    %s320 = sshll.u32 %s318, 4
    %s321 = int_to_ptr.hbm [resolvable:$true] %s320
    %s322 = sshll.u32 %s319, 4
    %s323 = int_to_ptr.vmem [resolvable:$true] %s322
    %327 = dma.hbm_to_vmem [thread:$0]  %s321, 48, %s323, [#allocation5], 128, 128, 1
    %s328 = sadd.s32 %s57, 17
    %s329 = sld [smem:[#allocation7 + %s328]]
    %s330 = sshrl.u32 %s329, 3
    %s331 = sand.u32 %s329, 7
    %s332 = smul.u32 %s330, 24
    %s333 = sadd.s32 %s331, %s332
    %s334 = scalar_lea.hbm %s4, %s333
    %s335 = scalar_lea.vmem [#allocation4], 49
    %s336 = sshll.u32 %s334, 4
    %s337 = int_to_ptr.hbm [resolvable:$true] %s336
    %s338 = sshll.u32 %s335, 4
    %s339 = int_to_ptr.vmem [resolvable:$true] %s338
    %343 = dma.hbm_to_vmem [thread:$0]  %s337, 48, %s339, [#allocation5], 128, 128, 1
    %s344 = sadd.s32 %s57, 18
    %s345 = sld [smem:[#allocation7 + %s344]]
    %s346 = sshrl.u32 %s345, 3
    %s347 = sand.u32 %s345, 7
    %s348 = smul.u32 %s346, 24
    %s349 = sadd.s32 %s347, %s348
    %s350 = scalar_lea.hbm %s4, %s349
    %s351 = scalar_lea.vmem [#allocation4], 50
    %s352 = sshll.u32 %s350, 4
    %s353 = int_to_ptr.hbm [resolvable:$true] %s352
    %s354 = sshll.u32 %s351, 4
    %s355 = int_to_ptr.vmem [resolvable:$true] %s354
    %359 = dma.hbm_to_vmem [thread:$0]  %s353, 48, %s355, [#allocation5], 128, 128, 1
    %s360 = sadd.s32 %s57, 19
    %s361 = sld [smem:[#allocation7 + %s360]]
    %s362 = sshrl.u32 %s361, 3
    %s363 = sand.u32 %s361, 7
    %s364 = smul.u32 %s362, 24
    %s365 = sadd.s32 %s363, %s364
    %s366 = scalar_lea.hbm %s4, %s365
    %s367 = scalar_lea.vmem [#allocation4], 51
    %s368 = sshll.u32 %s366, 4
    %s369 = int_to_ptr.hbm [resolvable:$true] %s368
    %s370 = sshll.u32 %s367, 4
    %s371 = int_to_ptr.vmem [resolvable:$true] %s370
    %375 = dma.hbm_to_vmem [thread:$0]  %s369, 48, %s371, [#allocation5], 128, 128, 1
    %s376 = sadd.s32 %s57, 20
    %s377 = sld [smem:[#allocation7 + %s376]]
    %s378 = sshrl.u32 %s377, 3
    %s379 = sand.u32 %s377, 7
    %s380 = smul.u32 %s378, 24
    %s381 = sadd.s32 %s379, %s380
    %s382 = scalar_lea.hbm %s4, %s381
    %s383 = scalar_lea.vmem [#allocation4], 52
    %s384 = sshll.u32 %s382, 4
    %s385 = int_to_ptr.hbm [resolvable:$true] %s384
    %s386 = sshll.u32 %s383, 4
    %s387 = int_to_ptr.vmem [resolvable:$true] %s386
    %391 = dma.hbm_to_vmem [thread:$0]  %s385, 48, %s387, [#allocation5], 128, 128, 1
    %s392 = sadd.s32 %s57, 21
    %s393 = sld [smem:[#allocation7 + %s392]]
    %s394 = sshrl.u32 %s393, 3
    %s395 = sand.u32 %s393, 7
    %s396 = smul.u32 %s394, 24
    %s397 = sadd.s32 %s395, %s396
    %s398 = scalar_lea.hbm %s4, %s397
    %s399 = scalar_lea.vmem [#allocation4], 53
    %s400 = sshll.u32 %s398, 4
    %s401 = int_to_ptr.hbm [resolvable:$true] %s400
    %s402 = sshll.u32 %s399, 4
    %s403 = int_to_ptr.vmem [resolvable:$true] %s402
    %407 = dma.hbm_to_vmem [thread:$0]  %s401, 48, %s403, [#allocation5], 128, 128, 1
    %s408 = sadd.s32 %s57, 22
    %s409 = sld [smem:[#allocation7 + %s408]]
    %s410 = sshrl.u32 %s409, 3
    %s411 = sand.u32 %s409, 7
    %s412 = smul.u32 %s410, 24
    %s413 = sadd.s32 %s411, %s412
    %s414 = scalar_lea.hbm %s4, %s413
    %s415 = scalar_lea.vmem [#allocation4], 54
    %s416 = sshll.u32 %s414, 4
    %s417 = int_to_ptr.hbm [resolvable:$true] %s416
    %s418 = sshll.u32 %s415, 4
    %s419 = int_to_ptr.vmem [resolvable:$true] %s418
    %423 = dma.hbm_to_vmem [thread:$0]  %s417, 48, %s419, [#allocation5], 128, 128, 1
    %s424 = sadd.s32 %s57, 23
    %s425 = sld [smem:[#allocation7 + %s424]]
    %s426 = sshrl.u32 %s425, 3
    %s427 = sand.u32 %s425, 7
    %s428 = smul.u32 %s426, 24
    %s429 = sadd.s32 %s427, %s428
    %s430 = scalar_lea.hbm %s4, %s429
    %s431 = scalar_lea.vmem [#allocation4], 55
    %s432 = sshll.u32 %s430, 4
    %s433 = int_to_ptr.hbm [resolvable:$true] %s432
    %s434 = sshll.u32 %s431, 4
    %s435 = int_to_ptr.vmem [resolvable:$true] %s434
    %439 = dma.hbm_to_vmem [thread:$0]  %s433, 48, %s435, [#allocation5], 128, 128, 1
    %p440 = scmp.eq.s32.totalorder 0, 0
    // Predicated region
    $region22: #{tpu_custom_call.1} parent=1 // pred_check
      %p441 = pneg %p440
    $region23: #{tpu_custom_call.1} parent=1 // pred_check_branch
      %443 = sbr.rel (%p441) target = $region25
    $region24: #{tpu_custom_call.1} parent=1 // pred_region
      %v444 = vld [vmem:[#allocation8] sm:$0xf]
      %v445 = vld [vmem:[#allocation8 + $0x4] sm:$0xf]
      %v446 = vld [vmem:[#allocation8 + $0x8] sm:$0xf]
      %v447 = vld [vmem:[#allocation8 + $0xc] sm:$0xf]
      %v448 = vld [vmem:[#allocation8 + $0x10] sm:$0xf]
      %v449 = vld [vmem:[#allocation8 + $0x14] sm:$0xf]
      %v450 = vld [vmem:[#allocation8 + $0x18] sm:$0xf]
      %v451 = vld [vmem:[#allocation8 + $0x1c] sm:$0xf]
      %v452 = vld [vmem:[#allocation8 + $0x20] sm:$0xf]
      %v453 = vld [vmem:[#allocation8 + $0x24] sm:$0xf]
      %v454 = vld [vmem:[#allocation8 + $0x28] sm:$0xf]
      %v455 = vld [vmem:[#allocation8 + $0x2c] sm:$0xf]
      %v456 = vld [vmem:[#allocation8 + $0x30] sm:$0xf]
      %v457 = vld [vmem:[#allocation8 + $0x34] sm:$0xf]
      %v458 = vld [vmem:[#allocation8 + $0x38] sm:$0xf]
      %v459 = vld [vmem:[#allocation8 + $0x3c] sm:$0xf]
      %v460 = vld [vmem:[#allocation8 + $0x40] sm:$0xf]
      %v461 = vld [vmem:[#allocation8 + $0x44] sm:$0xf]
      %v462 = vld [vmem:[#allocation8 + $0x48] sm:$0xf]
      %v463 = vld [vmem:[#allocation8 + $0x4c] sm:$0xf]
      %v464 = vld [vmem:[#allocation8 + $0x50] sm:$0xf]
      %v465 = vld [vmem:[#allocation8 + $0x54] sm:$0xf]
      %v466 = vld [vmem:[#allocation8 + $0x58] sm:$0xf]
      %v467 = vld [vmem:[#allocation8 + $0x5c] sm:$0xf]
      %v468 = vld [vmem:[#allocation8 + $0x60] sm:$0xf]
      %v469 = vld [vmem:[#allocation8 + $0x64] sm:$0xf]
      %v470 = vld [vmem:[#allocation8 + $0x68] sm:$0xf]
      %v471 = vld [vmem:[#allocation8 + $0x6c] sm:$0xf]
      %v472 = vld [vmem:[#allocation8 + $0x70] sm:$0xf]
      %v473 = vld [vmem:[#allocation8 + $0x74] sm:$0xf]
      %v474 = vld [vmem:[#allocation8 + $0x78] sm:$0xf]
      %v475 = vld [vmem:[#allocation8 + $0x7c] sm:$0xf]
      %v476 = vld [vmem:[#allocation8 + $0x80] sm:$0xf]
      %v477 = vld [vmem:[#allocation8 + $0x84] sm:$0xf]
      %v478 = vld [vmem:[#allocation8 + $0x88] sm:$0xf]
      %v479 = vld [vmem:[#allocation8 + $0x8c] sm:$0xf]
      %v480 = vld [vmem:[#allocation8 + $0x90] sm:$0xf]
      %v481 = vld [vmem:[#allocation8 + $0x94] sm:$0xf]
      %v482 = vld [vmem:[#allocation8 + $0x98] sm:$0xf]
      %v483 = vld [vmem:[#allocation8 + $0x9c] sm:$0xf]
      %v484 = vld [vmem:[#allocation8 + $0xa0] sm:$0xf]
      %v485 = vld [vmem:[#allocation8 + $0xa4] sm:$0xf]
      %v486 = vld [vmem:[#allocation8 + $0xa8] sm:$0xf]
      %v487 = vld [vmem:[#allocation8 + $0xac] sm:$0xf]
      %v488 = vld [vmem:[#allocation8 + $0xb0] sm:$0xf]
      %v489 = vld [vmem:[#allocation8 + $0xb4] sm:$0xf]
      %v490 = vld [vmem:[#allocation8 + $0xb8] sm:$0xf]
      %v491 = vld [vmem:[#allocation8 + $0xbc] sm:$0xf]
      %v492 = vld [vmem:[#allocation11] sm:$0xff]
      %v493 = vld [vmem:[#allocation11 + $0x8] sm:$0xff]
      %v494 = vld [vmem:[#allocation11 + $0x10] sm:$0xff]
      %v495 = vld [vmem:[#allocation11 + $0x18] sm:$0xff]
      %v496 = vld [vmem:[#allocation11 + $0x20] sm:$0xff]
      %v497 = vld [vmem:[#allocation11 + $0x28] sm:$0xff]
      %v498 = vld [vmem:[#allocation11 + $0x30] sm:$0xff]
      %v499 = vld [vmem:[#allocation11 + $0x38] sm:$0xff]
      %v500 = vld [vmem:[#allocation11 + $0x40] sm:$0xff]
      %v501 = vld [vmem:[#allocation11 + $0x48] sm:$0xff]
      %v502 = vld [vmem:[#allocation11 + $0x50] sm:$0xff]
      %v503 = vld [vmem:[#allocation11 + $0x58] sm:$0xff]
      %v504 = vld [vmem:[#allocation11 + $0x60] sm:$0xff]
      %v505 = vld [vmem:[#allocation11 + $0x68] sm:$0xff]
      %v506 = vld [vmem:[#allocation11 + $0x70] sm:$0xff]
      %v507 = vld [vmem:[#allocation11 + $0x78] sm:$0xff]
      %v556 = vunpack.c.l.b16 %v444
      %v557 = vunpack.c.l.b16 %v445
      %v558 = vunpack.c.l.b16 %v446
      %v559 = vunpack.c.l.b16 %v447
      %v560 = vunpack.c.l.b16 %v448
      %v561 = vunpack.c.l.b16 %v449
      %v562 = vunpack.c.l.b16 %v450
      %v563 = vunpack.c.l.b16 %v451
      %v564 = vunpack.c.l.b16 %v452
      %v565 = vunpack.c.l.b16 %v453
      %v566 = vunpack.c.l.b16 %v454
      %v567 = vunpack.c.l.b16 %v455
      %v568 = vunpack.c.l.b16 %v456
      %v569 = vunpack.c.l.b16 %v457
      %v570 = vunpack.c.l.b16 %v458
      %v571 = vunpack.c.l.b16 %v459
      %v572 = vunpack.c.l.b16 %v460
      %v573 = vunpack.c.l.b16 %v461
      %v574 = vunpack.c.l.b16 %v462
      %v575 = vunpack.c.l.b16 %v463
      %v576 = vunpack.c.l.b16 %v464
      %v577 = vunpack.c.l.b16 %v465
      %v578 = vunpack.c.l.b16 %v466
      %v579 = vunpack.c.l.b16 %v467
      %v580 = vunpack.c.l.b16 %v468
      %v581 = vunpack.c.l.b16 %v469
      %v582 = vunpack.c.l.b16 %v470
      %v583 = vunpack.c.l.b16 %v471
      %v584 = vunpack.c.l.b16 %v472
      %v585 = vunpack.c.l.b16 %v473
      %v586 = vunpack.c.l.b16 %v474
      %v587 = vunpack.c.l.b16 %v475
      %v588 = vunpack.c.l.b16 %v476
      %v589 = vunpack.c.l.b16 %v477
      %v590 = vunpack.c.l.b16 %v478
      %v591 = vunpack.c.l.b16 %v479
      %v592 = vunpack.c.l.b16 %v480
      %v593 = vunpack.c.l.b16 %v481
      %v594 = vunpack.c.l.b16 %v482
      %v595 = vunpack.c.l.b16 %v483
      %v596 = vunpack.c.l.b16 %v484
      %v597 = vunpack.c.l.b16 %v485
      %v598 = vunpack.c.l.b16 %v486
      %v599 = vunpack.c.l.b16 %v487
      %v600 = vunpack.c.l.b16 %v488
      %v601 = vunpack.c.l.b16 %v489
      %v602 = vunpack.c.l.b16 %v490
      %v603 = vunpack.c.l.b16 %v491
      %v604 = vpack.c.b16 %v557, %v556
      %v605 = vpack.c.b16 %v559, %v558
      %v606 = vpack.c.b16 %v561, %v560
      %v607 = vpack.c.b16 %v563, %v562
      %v608 = vpack.c.b16 %v565, %v564
      %v609 = vpack.c.b16 %v567, %v566
      %v610 = vpack.c.b16 %v569, %v568
      %v611 = vpack.c.b16 %v571, %v570
      %v612 = vpack.c.b16 %v573, %v572
      %v613 = vpack.c.b16 %v575, %v574
      %v614 = vpack.c.b16 %v577, %v576
      %v615 = vpack.c.b16 %v579, %v578
      %v616 = vpack.c.b16 %v581, %v580
      %v617 = vpack.c.b16 %v583, %v582
      %v618 = vpack.c.b16 %v585, %v584
      %v619 = vpack.c.b16 %v587, %v586
      %v620 = vpack.c.b16 %v589, %v588
      %v621 = vpack.c.b16 %v591, %v590
      %v622 = vpack.c.b16 %v593, %v592
      %v623 = vpack.c.b16 %v595, %v594
      %v624 = vpack.c.b16 %v597, %v596
      %v625 = vpack.c.b16 %v599, %v598
      %v626 = vpack.c.b16 %v601, %v600
      %v627 = vpack.c.b16 %v603, %v602
      %v668 = vunpack.c.l.b16 %v492
      %v669 = vunpack.c.h.b16 %v492
      %v670 = vunpack.c.l.b16 %v493
      %v671 = vunpack.c.h.b16 %v493
      %v672 = vunpack.c.l.b16 %v494
      %v673 = vunpack.c.h.b16 %v494
      %v674 = vunpack.c.l.b16 %v495
      %v675 = vunpack.c.h.b16 %v495
      %v676 = vunpack.c.l.b16 %v496
      %v677 = vunpack.c.h.b16 %v496
      %v678 = vunpack.c.l.b16 %v497
      %v679 = vunpack.c.h.b16 %v497
      %v680 = vunpack.c.l.b16 %v498
      %v681 = vunpack.c.h.b16 %v498
      %v682 = vunpack.c.l.b16 %v499
      %v683 = vunpack.c.h.b16 %v499
      %v684 = vunpack.c.l.b16 %v500
      %v685 = vunpack.c.h.b16 %v500
      %v686 = vunpack.c.l.b16 %v501
      %v687 = vunpack.c.h.b16 %v501
      %v688 = vunpack.c.l.b16 %v502
      %v689 = vunpack.c.h.b16 %v502
      %v690 = vunpack.c.l.b16 %v503
      %v691 = vunpack.c.h.b16 %v503
      %v692 = vunpack.c.l.b16 %v504
      %v693 = vunpack.c.h.b16 %v504
      %v694 = vunpack.c.l.b16 %v505
      %v695 = vunpack.c.h.b16 %v505
      %v696 = vunpack.c.l.b16 %v506
      %v697 = vunpack.c.h.b16 %v506
      %v698 = vunpack.c.l.b16 %v507
      %v699 = vunpack.c.h.b16 %v507
      %v700 = vpack.c.b16 %v670, %v668
      %v701 = vpack.c.b16 %v671, %v669
      %v702 = vpack.c.b16 %v674, %v672
      %v703 = vpack.c.b16 %v675, %v673
      %v704 = vpack.c.b16 %v678, %v676
      %v705 = vpack.c.b16 %v679, %v677
      %v706 = vpack.c.b16 %v682, %v680
      %v707 = vpack.c.b16 %v683, %v681
      %v708 = vpack.c.b16 %v686, %v684
      %v709 = vpack.c.b16 %v687, %v685
      %v710 = vpack.c.b16 %v690, %v688
      %v711 = vpack.c.b16 %v691, %v689
      %v712 = vpack.c.b16 %v694, %v692
      %v713 = vpack.c.b16 %v695, %v693
      %v714 = vpack.c.b16 %v698, %v696
      %v715 = vpack.c.b16 %v699, %v697
      %732 = vmatpush.bf16.msra.mxu0 %v714
      %733 = vmatpush.bf16.msra.mxu0 %v712
      %734 = vmatpush.bf16.msra.mxu0 %v710
      %735 = vmatpush.bf16.msra.mxu0 %v708
      %736 = vmatpush.bf16.msra.mxu0 %v706
      %737 = vmatpush.bf16.msra.mxu0 %v704
      %738 = vmatpush.bf16.msra.mxu0 %v702
      %739 = vmatpush.bf16.msra.mxu0 %v700
      %740 = vmatmul.bf16.gmra.mxu0 %v604
      %v741 = vpop.f32.mrf.mxu0
      %v742 = vadd.f32 0.0, %v741
      %v743 = vpop.f32.mrf.mxu0
      %v744 = vadd.f32 0.0, %v743
      %745 = vmatmul.bf16.gmra.mxu0 %v605
      %v746 = vpop.f32.mrf.mxu0
      %v747 = vadd.f32 0.0, %v746
      %v748 = vpop.f32.mrf.mxu0
      %v749 = vadd.f32 0.0, %v748
      %750 = vmatmul.bf16.gmra.mxu0 %v606
      %v751 = vpop.f32.mrf.mxu0
      %v752 = vadd.f32 0.0, %v751
      %v753 = vpop.f32.mrf.mxu0
      %v754 = vadd.f32 0.0, %v753
      %755 = vmatmul.bf16.gmra.mxu0 %v607
      %v756 = vpop.f32.mrf.mxu0
      %v757 = vadd.f32 0.0, %v756
      %v758 = vpop.f32.mrf.mxu0
      %v759 = vadd.f32 0.0, %v758
      %760 = vmatmul.bf16.gmra.mxu0 %v608
      %v761 = vpop.f32.mrf.mxu0
      %v762 = vadd.f32 0.0, %v761
      %v763 = vpop.f32.mrf.mxu0
      %v764 = vadd.f32 0.0, %v763
      %765 = vmatmul.bf16.gmra.mxu0 %v609
      %v766 = vpop.f32.mrf.mxu0
      %v767 = vadd.f32 0.0, %v766
      %v768 = vpop.f32.mrf.mxu0
      %v769 = vadd.f32 0.0, %v768
      %770 = vmatmul.bf16.gmra.mxu0 %v610
      %v771 = vpop.f32.mrf.mxu0
      %v772 = vadd.f32 0.0, %v771
      %v773 = vpop.f32.mrf.mxu0
      %v774 = vadd.f32 0.0, %v773
      %775 = vmatmul.bf16.gmra.mxu0 %v611
      %v776 = vpop.f32.mrf.mxu0
      %v777 = vadd.f32 0.0, %v776
      %v778 = vpop.f32.mrf.mxu0
      %v779 = vadd.f32 0.0, %v778
      %780 = vmatmul.bf16.gmra.mxu0 %v612
      %v781 = vpop.f32.mrf.mxu0
      %v782 = vadd.f32 0.0, %v781
      %v783 = vpop.f32.mrf.mxu0
      %v784 = vadd.f32 0.0, %v783
      %785 = vmatmul.bf16.gmra.mxu0 %v613
      %v786 = vpop.f32.mrf.mxu0
      %v787 = vadd.f32 0.0, %v786
      %v788 = vpop.f32.mrf.mxu0
      %v789 = vadd.f32 0.0, %v788
      %790 = vmatmul.bf16.gmra.mxu0 %v614
      %v791 = vpop.f32.mrf.mxu0
      %v792 = vadd.f32 0.0, %v791
      %v793 = vpop.f32.mrf.mxu0
      %v794 = vadd.f32 0.0, %v793
      %795 = vmatmul.bf16.gmra.mxu0 %v615
      %v796 = vpop.f32.mrf.mxu0
      %v797 = vadd.f32 0.0, %v796
      %v798 = vpop.f32.mrf.mxu0
      %v799 = vadd.f32 0.0, %v798
      %800 = vmatmul.bf16.gmra.mxu0 %v616
      %v801 = vpop.f32.mrf.mxu0
      %v802 = vadd.f32 0.0, %v801
      %v803 = vpop.f32.mrf.mxu0
      %v804 = vadd.f32 0.0, %v803
      %805 = vmatmul.bf16.gmra.mxu0 %v617
      %v806 = vpop.f32.mrf.mxu0
      %v807 = vadd.f32 0.0, %v806
      %v808 = vpop.f32.mrf.mxu0
      %v809 = vadd.f32 0.0, %v808
      %810 = vmatmul.bf16.gmra.mxu0 %v618
      %v811 = vpop.f32.mrf.mxu0
      %v812 = vadd.f32 0.0, %v811
      %v813 = vpop.f32.mrf.mxu0
      %v814 = vadd.f32 0.0, %v813
      %815 = vmatmul.bf16.gmra.mxu0 %v619
      %v816 = vpop.f32.mrf.mxu0
      %v817 = vadd.f32 0.0, %v816
      %v818 = vpop.f32.mrf.mxu0
      %v819 = vadd.f32 0.0, %v818
      %820 = vmatmul.bf16.gmra.mxu0 %v620
      %v821 = vpop.f32.mrf.mxu0
      %v822 = vadd.f32 0.0, %v821
      %v823 = vpop.f32.mrf.mxu0
      %v824 = vadd.f32 0.0, %v823
      %825 = vmatmul.bf16.gmra.mxu0 %v621
      %v826 = vpop.f32.mrf.mxu0
      %v827 = vadd.f32 0.0, %v826
      %v828 = vpop.f32.mrf.mxu0
      %v829 = vadd.f32 0.0, %v828
      %830 = vmatmul.bf16.gmra.mxu0 %v622
      %v831 = vpop.f32.mrf.mxu0
      %v832 = vadd.f32 0.0, %v831
      %v833 = vpop.f32.mrf.mxu0
      %v834 = vadd.f32 0.0, %v833
      %835 = vmatmul.bf16.gmra.mxu0 %v623
      %v836 = vpop.f32.mrf.mxu0
      %v837 = vadd.f32 0.0, %v836
      %v838 = vpop.f32.mrf.mxu0
      %v839 = vadd.f32 0.0, %v838
      %840 = vmatmul.bf16.gmra.mxu0 %v624
      %v841 = vpop.f32.mrf.mxu0
      %v842 = vadd.f32 0.0, %v841
      %v843 = vpop.f32.mrf.mxu0
      %v844 = vadd.f32 0.0, %v843
      %845 = vmatmul.bf16.gmra.mxu0 %v625
      %v846 = vpop.f32.mrf.mxu0
      %v847 = vadd.f32 0.0, %v846
      %v848 = vpop.f32.mrf.mxu0
      %v849 = vadd.f32 0.0, %v848
      %850 = vmatmul.bf16.gmra.mxu0 %v626
      %v851 = vpop.f32.mrf.mxu0
      %v852 = vadd.f32 0.0, %v851
      %v853 = vpop.f32.mrf.mxu0
      %v854 = vadd.f32 0.0, %v853
      %855 = vmatmul.bf16.gmra.mxu0 %v627
      %v856 = vpop.f32.mrf.mxu0
      %v857 = vadd.f32 0.0, %v856
      %v858 = vpop.f32.mrf.mxu0
      %v859 = vadd.f32 0.0, %v858
      %860 = vdwg.mxu0
      %861 = vmatpush.bf16.msra.mxu0 %v715
      %862 = vmatpush.bf16.msra.mxu0 %v713
      %863 = vmatpush.bf16.msra.mxu0 %v711
      %864 = vmatpush.bf16.msra.mxu0 %v709
      %865 = vmatpush.bf16.msra.mxu0 %v707
      %866 = vmatpush.bf16.msra.mxu0 %v705
      %867 = vmatpush.bf16.msra.mxu0 %v703
      %868 = vmatpush.bf16.msra.mxu0 %v701
      %869 = vmatmul.bf16.gmra.mxu0 %v604
      %v870 = vpop.f32.mrf.mxu0
      %v871 = vadd.f32 0.0, %v870
      %v872 = vpop.f32.mrf.mxu0
      %v873 = vadd.f32 0.0, %v872
      %874 = vmatmul.bf16.gmra.mxu0 %v605
      %v875 = vpop.f32.mrf.mxu0
      %v876 = vadd.f32 0.0, %v875
      %v877 = vpop.f32.mrf.mxu0
      %v878 = vadd.f32 0.0, %v877
      %879 = vmatmul.bf16.gmra.mxu0 %v606
      %v880 = vpop.f32.mrf.mxu0
      %v881 = vadd.f32 0.0, %v880
      %v882 = vpop.f32.mrf.mxu0
      %v883 = vadd.f32 0.0, %v882
      %884 = vmatmul.bf16.gmra.mxu0 %v607
      %v885 = vpop.f32.mrf.mxu0
      %v886 = vadd.f32 0.0, %v885
      %v887 = vpop.f32.mrf.mxu0
      %v888 = vadd.f32 0.0, %v887
      %889 = vmatmul.bf16.gmra.mxu0 %v608
      %v890 = vpop.f32.mrf.mxu0
      %v891 = vadd.f32 0.0, %v890
      %v892 = vpop.f32.mrf.mxu0
      %v893 = vadd.f32 0.0, %v892
      %894 = vmatmul.bf16.gmra.mxu0 %v609
      %v895 = vpop.f32.mrf.mxu0
      %v896 = vadd.f32 0.0, %v895
      %v897 = vpop.f32.mrf.mxu0
      %v898 = vadd.f32 0.0, %v897
      %899 = vmatmul.bf16.gmra.mxu0 %v610
      %v900 = vpop.f32.mrf.mxu0
      %v901 = vadd.f32 0.0, %v900
      %v902 = vpop.f32.mrf.mxu0
      %v903 = vadd.f32 0.0, %v902
      %904 = vmatmul.bf16.gmra.mxu0 %v611
      %v905 = vpop.f32.mrf.mxu0
      %v906 = vadd.f32 0.0, %v905
      %v907 = vpop.f32.mrf.mxu0
      %v908 = vadd.f32 0.0, %v907
      %909 = vmatmul.bf16.gmra.mxu0 %v612
      %v910 = vpop.f32.mrf.mxu0
      %v911 = vadd.f32 0.0, %v910
      %v912 = vpop.f32.mrf.mxu0
      %v913 = vadd.f32 0.0, %v912
      %914 = vmatmul.bf16.gmra.mxu0 %v613
      %v915 = vpop.f32.mrf.mxu0
      %v916 = vadd.f32 0.0, %v915
      %v917 = vpop.f32.mrf.mxu0
      %v918 = vadd.f32 0.0, %v917
      %919 = vmatmul.bf16.gmra.mxu0 %v614
      %v920 = vpop.f32.mrf.mxu0
      %v921 = vadd.f32 0.0, %v920
      %v922 = vpop.f32.mrf.mxu0
      %v923 = vadd.f32 0.0, %v922
      %924 = vmatmul.bf16.gmra.mxu0 %v615
      %v925 = vpop.f32.mrf.mxu0
      %v926 = vadd.f32 0.0, %v925
      %v927 = vpop.f32.mrf.mxu0
      %v928 = vadd.f32 0.0, %v927
      %929 = vmatmul.bf16.gmra.mxu0 %v616
      %v930 = vpop.f32.mrf.mxu0
      %v931 = vadd.f32 0.0, %v930
      %v932 = vpop.f32.mrf.mxu0
      %v933 = vadd.f32 0.0, %v932
      %934 = vmatmul.bf16.gmra.mxu0 %v617
      %v935 = vpop.f32.mrf.mxu0
      %v936 = vadd.f32 0.0, %v935
      %v937 = vpop.f32.mrf.mxu0
      %v938 = vadd.f32 0.0, %v937
      %939 = vmatmul.bf16.gmra.mxu0 %v618
      %v940 = vpop.f32.mrf.mxu0
      %v941 = vadd.f32 0.0, %v940
      %v942 = vpop.f32.mrf.mxu0
      %v943 = vadd.f32 0.0, %v942
      %944 = vmatmul.bf16.gmra.mxu0 %v619
      %v945 = vpop.f32.mrf.mxu0
      %v946 = vadd.f32 0.0, %v945
      %v947 = vpop.f32.mrf.mxu0
      %v948 = vadd.f32 0.0, %v947
      %949 = vmatmul.bf16.gmra.mxu0 %v620
      %v950 = vpop.f32.mrf.mxu0
      %v951 = vadd.f32 0.0, %v950
      %v952 = vpop.f32.mrf.mxu0
      %v953 = vadd.f32 0.0, %v952
      %954 = vmatmul.bf16.gmra.mxu0 %v621
      %v955 = vpop.f32.mrf.mxu0
      %v956 = vadd.f32 0.0, %v955
      %v957 = vpop.f32.mrf.mxu0
      %v958 = vadd.f32 0.0, %v957
      %959 = vmatmul.bf16.gmra.mxu0 %v622
      %v960 = vpop.f32.mrf.mxu0
      %v961 = vadd.f32 0.0, %v960
      %v962 = vpop.f32.mrf.mxu0
      %v963 = vadd.f32 0.0, %v962
      %964 = vmatmul.bf16.gmra.mxu0 %v623
      %v965 = vpop.f32.mrf.mxu0
      %v966 = vadd.f32 0.0, %v965
      %v967 = vpop.f32.mrf.mxu0
      %v968 = vadd.f32 0.0, %v967
      %969 = vmatmul.bf16.gmra.mxu0 %v624
      %v970 = vpop.f32.mrf.mxu0
      %v971 = vadd.f32 0.0, %v970
      %v972 = vpop.f32.mrf.mxu0
      %v973 = vadd.f32 0.0, %v972
      %974 = vmatmul.bf16.gmra.mxu0 %v625
      %v975 = vpop.f32.mrf.mxu0
      %v976 = vadd.f32 0.0, %v975
      %v977 = vpop.f32.mrf.mxu0
      %v978 = vadd.f32 0.0, %v977
      %979 = vmatmul.bf16.gmra.mxu0 %v626
      %v980 = vpop.f32.mrf.mxu0
      %v981 = vadd.f32 0.0, %v980
      %v982 = vpop.f32.mrf.mxu0
      %v983 = vadd.f32 0.0, %v982
      %984 = vmatmul.bf16.gmra.mxu0 %v627
      %v985 = vpop.f32.mrf.mxu0
      %v986 = vadd.f32 0.0, %v985
      %v987 = vpop.f32.mrf.mxu0
      %v988 = vadd.f32 0.0, %v987
      %989 = vdwg.mxu0
      %990 = vst [vmem:[#allocation2] sm:$0xff] %v742
      %991 = vst [vmem:[#allocation2 + $0x8] sm:$0xff] %v744
      %992 = vst [vmem:[#allocation2 + $0x10] sm:$0xff] %v747
      %993 = vst [vmem:[#allocation2 + $0x18] sm:$0xff] %v749
      %994 = vst [vmem:[#allocation2 + $0x20] sm:$0xff] %v752
      %995 = vst [vmem:[#allocation2 + $0x28] sm:$0xff] %v754
      %996 = vst [vmem:[#allocation2 + $0x30] sm:$0xff] %v757
      %997 = vst [vmem:[#allocation2 + $0x38] sm:$0xff] %v759
      %998 = vst [vmem:[#allocation2 + $0x40] sm:$0xff] %v762
      %999 = vst [vmem:[#allocation2 + $0x48] sm:$0xff] %v764
      %1000 = vst [vmem:[#allocation2 + $0x50] sm:$0xff] %v767
      %1001 = vst [vmem:[#allocation2 + $0x58] sm:$0xff] %v769
      %1002 = vst [vmem:[#allocation2 + $0x60] sm:$0xff] %v772
      %1003 = vst [vmem:[#allocation2 + $0x68] sm:$0xff] %v774
      %1004 = vst [vmem:[#allocation2 + $0x70] sm:$0xff] %v777
      %1005 = vst [vmem:[#allocation2 + $0x78] sm:$0xff] %v779
      %1006 = vst [vmem:[#allocation2 + $0x80] sm:$0xff] %v782
      %1007 = vst [vmem:[#allocation2 + $0x88] sm:$0xff] %v784
      %1008 = vst [vmem:[#allocation2 + $0x90] sm:$0xff] %v787
      %1009 = vst [vmem:[#allocation2 + $0x98] sm:$0xff] %v789
      %1010 = vst [vmem:[#allocation2 + $0xa0] sm:$0xff] %v792
      %1011 = vst [vmem:[#allocation2 + $0xa8] sm:$0xff] %v794
      %1012 = vst [vmem:[#allocation2 + $0xb0] sm:$0xff] %v797
      %1013 = vst [vmem:[#allocation2 + $0xb8] sm:$0xff] %v799
      %1014 = vst [vmem:[#allocation2 + $0xc0] sm:$0xff] %v802
      %1015 = vst [vmem:[#allocation2 + $0xc8] sm:$0xff] %v804
      %1016 = vst [vmem:[#allocation2 + $0xd0] sm:$0xff] %v807
      %1017 = vst [vmem:[#allocation2 + $0xd8] sm:$0xff] %v809
      %1018 = vst [vmem:[#allocation2 + $0xe0] sm:$0xff] %v812
      %1019 = vst [vmem:[#allocation2 + $0xe8] sm:$0xff] %v814
      %1020 = vst [vmem:[#allocation2 + $0xf0] sm:$0xff] %v817
      %1021 = vst [vmem:[#allocation2 + $0xf8] sm:$0xff] %v819
      %1022 = vst [vmem:[#allocation2 + $0x100] sm:$0xff] %v822
      %1023 = vst [vmem:[#allocation2 + $0x108] sm:$0xff] %v824
      %1024 = vst [vmem:[#allocation2 + $0x110] sm:$0xff] %v827
      %1025 = vst [vmem:[#allocation2 + $0x118] sm:$0xff] %v829
      %1026 = vst [vmem:[#allocation2 + $0x120] sm:$0xff] %v832
      %1027 = vst [vmem:[#allocation2 + $0x128] sm:$0xff] %v834
      %1028 = vst [vmem:[#allocation2 + $0x130] sm:$0xff] %v837
      %1029 = vst [vmem:[#allocation2 + $0x138] sm:$0xff] %v839
      %1030 = vst [vmem:[#allocation2 + $0x140] sm:$0xff] %v842
      %1031 = vst [vmem:[#allocation2 + $0x148] sm:$0xff] %v844
      %1032 = vst [vmem:[#allocation2 + $0x150] sm:$0xff] %v847
      %1033 = vst [vmem:[#allocation2 + $0x158] sm:$0xff] %v849
      %1034 = vst [vmem:[#allocation2 + $0x160] sm:$0xff] %v852
      %1035 = vst [vmem:[#allocation2 + $0x168] sm:$0xff] %v854
      %1036 = vst [vmem:[#allocation2 + $0x170] sm:$0xff] %v857
      %1037 = vst [vmem:[#allocation2 + $0x178] sm:$0xff] %v859
      %1038 = vst [vmem:[#allocation3] sm:$0xff] %v871
      %1039 = vst [vmem:[#allocation3 + $0x8] sm:$0xff] %v873
      %1040 = vst [vmem:[#allocation3 + $0x10] sm:$0xff] %v876
      %1041 = vst [vmem:[#allocation3 + $0x18] sm:$0xff] %v878
      %1042 = vst [vmem:[#allocation3 + $0x20] sm:$0xff] %v881
      %1043 = vst [vmem:[#allocation3 + $0x28] sm:$0xff] %v883
      %1044 = vst [vmem:[#allocation3 + $0x30] sm:$0xff] %v886
      %1045 = vst [vmem:[#allocation3 + $0x38] sm:$0xff] %v888
      %1046 = vst [vmem:[#allocation3 + $0x40] sm:$0xff] %v891
      %1047 = vst [vmem:[#allocation3 + $0x48] sm:$0xff] %v893
      %1048 = vst [vmem:[#allocation3 + $0x50] sm:$0xff] %v896
      %1049 = vst [vmem:[#allocation3 + $0x58] sm:$0xff] %v898
      %1050 = vst [vmem:[#allocation3 + $0x60] sm:$0xff] %v901
      %1051 = vst [vmem:[#allocation3 + $0x68] sm:$0xff] %v903
      %1052 = vst [vmem:[#allocation3 + $0x70] sm:$0xff] %v906
      %1053 = vst [vmem:[#allocation3 + $0x78] sm:$0xff] %v908
      %1054 = vst [vmem:[#allocation3 + $0x80] sm:$0xff] %v911
      %1055 = vst [vmem:[#allocation3 + $0x88] sm:$0xff] %v913
      %1056 = vst [vmem:[#allocation3 + $0x90] sm:$0xff] %v916
      %1057 = vst [vmem:[#allocation3 + $0x98] sm:$0xff] %v918
      %1058 = vst [vmem:[#allocation3 + $0xa0] sm:$0xff] %v921
      %1059 = vst [vmem:[#allocation3 + $0xa8] sm:$0xff] %v923
      %1060 = vst [vmem:[#allocation3 + $0xb0] sm:$0xff] %v926
      %1061 = vst [vmem:[#allocation3 + $0xb8] sm:$0xff] %v928
      %1062 = vst [vmem:[#allocation3 + $0xc0] sm:$0xff] %v931
      %1063 = vst [vmem:[#allocation3 + $0xc8] sm:$0xff] %v933
      %1064 = vst [vmem:[#allocation3 + $0xd0] sm:$0xff] %v936
      %1065 = vst [vmem:[#allocation3 + $0xd8] sm:$0xff] %v938
      %1066 = vst [vmem:[#allocation3 + $0xe0] sm:$0xff] %v941
      %1067 = vst [vmem:[#allocation3 + $0xe8] sm:$0xff] %v943
      %1068 = vst [vmem:[#allocation3 + $0xf0] sm:$0xff] %v946
      %1069 = vst [vmem:[#allocation3 + $0xf8] sm:$0xff] %v948
      %1070 = vst [vmem:[#allocation3 + $0x100] sm:$0xff] %v951
      %1071 = vst [vmem:[#allocation3 + $0x108] sm:$0xff] %v953
      %1072 = vst [vmem:[#allocation3 + $0x110] sm:$0xff] %v956
      %1073 = vst [vmem:[#allocation3 + $0x118] sm:$0xff] %v958
      %1074 = vst [vmem:[#allocation3 + $0x120] sm:$0xff] %v961
      %1075 = vst [vmem:[#allocation3 + $0x128] sm:$0xff] %v963
      %1076 = vst [vmem:[#allocation3 + $0x130] sm:$0xff] %v966
      %1077 = vst [vmem:[#allocation3 + $0x138] sm:$0xff] %v968
      %1078 = vst [vmem:[#allocation3 + $0x140] sm:$0xff] %v971
      %1079 = vst [vmem:[#allocation3 + $0x148] sm:$0xff] %v973
      %1080 = vst [vmem:[#allocation3 + $0x150] sm:$0xff] %v976
      %1081 = vst [vmem:[#allocation3 + $0x158] sm:$0xff] %v978
      %1082 = vst [vmem:[#allocation3 + $0x160] sm:$0xff] %v981
      %1083 = vst [vmem:[#allocation3 + $0x168] sm:$0xff] %v983
      %1084 = vst [vmem:[#allocation3 + $0x170] sm:$0xff] %v986
      %1085 = vst [vmem:[#allocation3 + $0x178] sm:$0xff] %v988
    $region25: #{tpu_custom_call.1} parent=1 // pred_fallthru
      _
    %s1086 = sld [smem:[#allocation7 + %s57]]
    %s1087 = scalar_lea.vmem [#allocation2], %s1086
    %v1088 = vld [vmem:[%s1087] sm:$0x1]
    %1089 = vst [vmem:[#allocation13] sm:$0x1] %v1088
    %s1090 = sld [smem:[#allocation7 + %s72]]
    %s1091 = scalar_lea.vmem [#allocation2], %s1090
    %v1092 = vld [vmem:[%s1091] sm:$0x1]
    %1093 = vst [vmem:[#allocation13 + $0x1] sm:$0x1] %v1092
    %s1094 = sld [smem:[#allocation7 + %s88]]
    %s1095 = scalar_lea.vmem [#allocation2], %s1094
    %v1096 = vld [vmem:[%s1095] sm:$0x1]
    %1097 = vst [vmem:[#allocation13 + $0x2] sm:$0x1] %v1096
    %s1098 = sld [smem:[#allocation7 + %s104]]
    %s1099 = scalar_lea.vmem [#allocation2], %s1098
    %v1100 = vld [vmem:[%s1099] sm:$0x1]
    %1101 = vst [vmem:[#allocation13 + $0x3] sm:$0x1] %v1100
    %s1102 = sld [smem:[#allocation7 + %s120]]
    %s1103 = scalar_lea.vmem [#allocation2], %s1102
    %v1104 = vld [vmem:[%s1103] sm:$0x1]
    %1105 = vst [vmem:[#allocation13 + $0x4] sm:$0x1] %v1104
    %s1106 = sld [smem:[#allocation7 + %s136]]
    %s1107 = scalar_lea.vmem [#allocation2], %s1106
    %v1108 = vld [vmem:[%s1107] sm:$0x1]
    %1109 = vst [vmem:[#allocation13 + $0x5] sm:$0x1] %v1108
    %s1110 = sld [smem:[#allocation7 + %s152]]
    %s1111 = scalar_lea.vmem [#allocation2], %s1110
    %v1112 = vld [vmem:[%s1111] sm:$0x1]
    %1113 = vst [vmem:[#allocation13 + $0x6] sm:$0x1] %v1112
    %s1114 = sld [smem:[#allocation7 + %s168]]
    %s1115 = scalar_lea.vmem [#allocation2], %s1114
    %v1116 = vld [vmem:[%s1115] sm:$0x1]
    %1117 = vst [vmem:[#allocation13 + $0x7] sm:$0x1] %v1116
    %s1118 = sld [smem:[#allocation7 + %s184]]
    %s1119 = scalar_lea.vmem [#allocation2], %s1118
    %v1120 = vld [vmem:[%s1119] sm:$0x1]
    %1121 = vst [vmem:[#allocation13 + $0x8] sm:$0x1] %v1120
    %s1122 = sld [smem:[#allocation7 + %s200]]
    %s1123 = scalar_lea.vmem [#allocation2], %s1122
    %v1124 = vld [vmem:[%s1123] sm:$0x1]
    %1125 = vst [vmem:[#allocation13 + $0x9] sm:$0x1] %v1124
    %s1126 = sld [smem:[#allocation7 + %s216]]
    %s1127 = scalar_lea.vmem [#allocation2], %s1126
    %v1128 = vld [vmem:[%s1127] sm:$0x1]
    %1129 = vst [vmem:[#allocation13 + $0xa] sm:$0x1] %v1128
    %s1130 = sld [smem:[#allocation7 + %s232]]
    %s1131 = scalar_lea.vmem [#allocation2], %s1130
    %v1132 = vld [vmem:[%s1131] sm:$0x1]
    %1133 = vst [vmem:[#allocation13 + $0xb] sm:$0x1] %v1132
    %s1134 = sld [smem:[#allocation7 + %s248]]
    %s1135 = scalar_lea.vmem [#allocation2], %s1134
    %v1136 = vld [vmem:[%s1135] sm:$0x1]
    %1137 = vst [vmem:[#allocation13 + $0xc] sm:$0x1] %v1136
    %s1138 = sld [smem:[#allocation7 + %s264]]
    %s1139 = scalar_lea.vmem [#allocation2], %s1138
    %v1140 = vld [vmem:[%s1139] sm:$0x1]
    %1141 = vst [vmem:[#allocation13 + $0xd] sm:$0x1] %v1140
    %s1142 = sld [smem:[#allocation7 + %s280]]
    %s1143 = scalar_lea.vmem [#allocation2], %s1142
    %v1144 = vld [vmem:[%s1143] sm:$0x1]
    %1145 = vst [vmem:[#allocation13 + $0xe] sm:$0x1] %v1144
    %s1146 = sld [smem:[#allocation7 + %s296]]
    %s1147 = scalar_lea.vmem [#allocation2], %s1146
    %v1148 = vld [vmem:[%s1147] sm:$0x1]
    %1149 = vst [vmem:[#allocation13 + $0xf] sm:$0x1] %v1148
    %s1150 = sld [smem:[#allocation7 + %s312]]
    %s1151 = scalar_lea.vmem [#allocation2], %s1150
    %v1152 = vld [vmem:[%s1151] sm:$0x1]
    %1153 = vst [vmem:[#allocation13 + $0x10] sm:$0x1] %v1152
    %s1154 = sld [smem:[#allocation7 + %s328]]
    %s1155 = scalar_lea.vmem [#allocation2], %s1154
    %v1156 = vld [vmem:[%s1155] sm:$0x1]
    %1157 = vst [vmem:[#allocation13 + $0x11] sm:$0x1] %v1156
    %s1158 = sld [smem:[#allocation7 + %s344]]
    %s1159 = scalar_lea.vmem [#allocation2], %s1158
    %v1160 = vld [vmem:[%s1159] sm:$0x1]
    %1161 = vst [vmem:[#allocation13 + $0x12] sm:$0x1] %v1160
    %s1162 = sld [smem:[#allocation7 + %s360]]
    %s1163 = scalar_lea.vmem [#allocation2], %s1162
    %v1164 = vld [vmem:[%s1163] sm:$0x1]
    %1165 = vst [vmem:[#allocation13 + $0x13] sm:$0x1] %v1164
    %s1166 = sld [smem:[#allocation7 + %s376]]
    %s1167 = scalar_lea.vmem [#allocation2], %s1166
    %v1168 = vld [vmem:[%s1167] sm:$0x1]
    %1169 = vst [vmem:[#allocation13 + $0x14] sm:$0x1] %v1168
    %s1170 = sld [smem:[#allocation7 + %s392]]
    %s1171 = scalar_lea.vmem [#allocation2], %s1170
    %v1172 = vld [vmem:[%s1171] sm:$0x1]
    %1173 = vst [vmem:[#allocation13 + $0x15] sm:$0x1] %v1172
    %s1174 = sld [smem:[#allocation7 + %s408]]
    %s1175 = scalar_lea.vmem [#allocation2], %s1174
    %v1176 = vld [vmem:[%s1175] sm:$0x1]
    %1177 = vst [vmem:[#allocation13 + $0x16] sm:$0x1] %v1176
    %s1178 = sld [smem:[#allocation7 + %s424]]
    %s1179 = scalar_lea.vmem [#allocation2], %s1178
    %v1180 = vld [vmem:[%s1179] sm:$0x1]
    %1181 = vst [vmem:[#allocation13 + $0x17] sm:$0x1] %v1180
    %s1182 = sld [smem:[#allocation7 + %s57]]
    %s1183 = smul.u32 1, 3
    %s1184 = sshll.u32 %s1183, 4
    %1185 = dma.done [#allocation5], %s1184
    %s1186 = sld [smem:[#allocation7 + %s72]]
    %s1187 = sshll.u32 %s1183, 4
    %1188 = dma.done [#allocation5], %s1187
    %s1189 = sld [smem:[#allocation7 + %s88]]
    %s1190 = sshll.u32 %s1183, 4
    %1191 = dma.done [#allocation5], %s1190
    %s1192 = sld [smem:[#allocation7 + %s104]]
    %s1193 = sshll.u32 %s1183, 4
    %1194 = dma.done [#allocation5], %s1193
    %s1195 = sld [smem:[#allocation7 + %s120]]
    %s1196 = sshll.u32 %s1183, 4
    %1197 = dma.done [#allocation5], %s1196
    %s1198 = sld [smem:[#allocation7 + %s136]]
    %s1199 = sshll.u32 %s1183, 4
    %1200 = dma.done [#allocation5], %s1199
    %s1201 = sld [smem:[#allocation7 + %s152]]
    %s1202 = sshll.u32 %s1183, 4
    %1203 = dma.done [#allocation5], %s1202
    %s1204 = sld [smem:[#allocation7 + %s168]]
    %s1205 = sshll.u32 %s1183, 4
    %1206 = dma.done [#allocation5], %s1205
    %s1207 = sld [smem:[#allocation7 + %s184]]
    %s1208 = sshll.u32 %s1183, 4
    %1209 = dma.done [#allocation5], %s1208
    %s1210 = sld [smem:[#allocation7 + %s200]]
    %s1211 = sshll.u32 %s1183, 4
    %1212 = dma.done [#allocation5], %s1211
    %s1213 = sld [smem:[#allocation7 + %s216]]
    %s1214 = sshll.u32 %s1183, 4
    %1215 = dma.done [#allocation5], %s1214
    %s1216 = sld [smem:[#allocation7 + %s232]]
    %s1217 = sshll.u32 %s1183, 4
    %1218 = dma.done [#allocation5], %s1217
    %s1219 = sld [smem:[#allocation7 + %s248]]
    %s1220 = sshll.u32 %s1183, 4
    %1221 = dma.done [#allocation5], %s1220
    %s1222 = sld [smem:[#allocation7 + %s264]]
    %s1223 = sshll.u32 %s1183, 4
    %1224 = dma.done [#allocation5], %s1223
    %s1225 = sld [smem:[#allocation7 + %s280]]
    %s1226 = sshll.u32 %s1183, 4
    %1227 = dma.done [#allocation5], %s1226
    %s1228 = sld [smem:[#allocation7 + %s296]]
    %s1229 = sshll.u32 %s1183, 4
    %1230 = dma.done [#allocation5], %s1229
    %s1231 = sld [smem:[#allocation7 + %s312]]
    %s1232 = sshll.u32 %s1183, 4
    %1233 = dma.done [#allocation5], %s1232
    %s1234 = sld [smem:[#allocation7 + %s328]]
    %s1235 = sshll.u32 %s1183, 4
    %1236 = dma.done [#allocation5], %s1235
    %s1237 = sld [smem:[#allocation7 + %s344]]
    %s1238 = sshll.u32 %s1183, 4
    %1239 = dma.done [#allocation5], %s1238
    %s1240 = sld [smem:[#allocation7 + %s360]]
    %s1241 = sshll.u32 %s1183, 4
    %1242 = dma.done [#allocation5], %s1241
    %s1243 = sld [smem:[#allocation7 + %s376]]
    %s1244 = sshll.u32 %s1183, 4
    %1245 = dma.done [#allocation5], %s1244
    %s1246 = sld [smem:[#allocation7 + %s392]]
    %s1247 = sshll.u32 %s1183, 4
    %1248 = dma.done [#allocation5], %s1247
    %s1249 = sld [smem:[#allocation7 + %s408]]
    %s1250 = sshll.u32 %s1183, 4
    %1251 = dma.done [#allocation5], %s1250
    %s1252 = sld [smem:[#allocation7 + %s424]]
    %s1253 = sshll.u32 %s1183, 4
    %1254 = dma.done [#allocation5], %s1253
    %v1255 = vld [vmem:[#allocation4] sm:$0xff]
    %v1256 = vld [vmem:[#allocation4 + $0x8] sm:$0xff]
    %v1257 = vld [vmem:[#allocation4 + $0x10] sm:$0xff]
    %v1258 = vld [vmem:[#allocation4 + $0x18] sm:$0xff]
    %v1259 = vld [vmem:[#allocation4 + $0x20] sm:$0xff]
    %v1260 = vld [vmem:[#allocation4 + $0x28] sm:$0xff]
    %v1261 = vld [vmem:[#allocation4 + $0x30] sm:$0xff]
    %v1262 = vld [vmem:[#allocation4 + $0x38] sm:$0xff]
    %v1263 = vld [vmem:[#allocation4 + $0x40] sm:$0xff]
    %v1264 = vld [vmem:[#allocation3] sm:$0xff]
    %v1265 = vld [vmem:[#allocation3 + $0x8] sm:$0xff]
    %v1266 = vld [vmem:[#allocation3 + $0x10] sm:$0xff]
    %v1267 = vld [vmem:[#allocation3 + $0x18] sm:$0xff]
    %v1268 = vld [vmem:[#allocation3 + $0x20] sm:$0xff]
    %v1269 = vld [vmem:[#allocation3 + $0x28] sm:$0xff]
    %v1270 = vld [vmem:[#allocation3 + $0x30] sm:$0xff]
    %v1271 = vld [vmem:[#allocation3 + $0x38] sm:$0xff]
    %v1272 = vld [vmem:[#allocation3 + $0x40] sm:$0xff]
    %v1273 = vld [vmem:[#allocation3 + $0x48] sm:$0xff]
    %v1274 = vld [vmem:[#allocation3 + $0x50] sm:$0xff]
    %v1275 = vld [vmem:[#allocation3 + $0x58] sm:$0xff]
    %v1276 = vld [vmem:[#allocation3 + $0x60] sm:$0xff]
    %v1277 = vld [vmem:[#allocation3 + $0x68] sm:$0xff]
    %v1278 = vld [vmem:[#allocation3 + $0x70] sm:$0xff]
    %v1279 = vld [vmem:[#allocation3 + $0x78] sm:$0xff]
    %v1280 = vld [vmem:[#allocation3 + $0x80] sm:$0xff]
    %v1281 = vld [vmem:[#allocation3 + $0x88] sm:$0xff]
    %v1282 = vld [vmem:[#allocation3 + $0x90] sm:$0xff]
    %v1283 = vld [vmem:[#allocation3 + $0x98] sm:$0xff]
    %v1284 = vld [vmem:[#allocation3 + $0xa0] sm:$0xff]
    %v1285 = vld [vmem:[#allocation3 + $0xa8] sm:$0xff]
    %v1286 = vld [vmem:[#allocation3 + $0xb0] sm:$0xff]
    %v1287 = vld [vmem:[#allocation3 + $0xb8] sm:$0xff]
    %v1288 = vld [vmem:[#allocation3 + $0xc0] sm:$0xff]
    %v1289 = vld [vmem:[#allocation3 + $0xc8] sm:$0xff]
    %v1290 = vld [vmem:[#allocation3 + $0xd0] sm:$0xff]
    %v1291 = vld [vmem:[#allocation3 + $0xd8] sm:$0xff]
    %v1292 = vld [vmem:[#allocation3 + $0xe0] sm:$0xff]
    %v1293 = vld [vmem:[#allocation3 + $0xe8] sm:$0xff]
    %v1294 = vld [vmem:[#allocation3 + $0xf0] sm:$0xff]
    %v1295 = vld [vmem:[#allocation3 + $0xf8] sm:$0xff]
    %v1296 = vld [vmem:[#allocation3 + $0x100] sm:$0xff]
    %v1297 = vld [vmem:[#allocation3 + $0x108] sm:$0xff]
    %v1298 = vld [vmem:[#allocation3 + $0x110] sm:$0xff]
    %v1299 = vld [vmem:[#allocation3 + $0x118] sm:$0xff]
    %v1300 = vld [vmem:[#allocation3 + $0x120] sm:$0xff]
    %v1301 = vld [vmem:[#allocation3 + $0x128] sm:$0xff]
    %v1302 = vld [vmem:[#allocation3 + $0x130] sm:$0xff]
    %v1303 = vld [vmem:[#allocation3 + $0x138] sm:$0xff]
    %v1304 = vld [vmem:[#allocation3 + $0x140] sm:$0xff]
    %v1305 = vld [vmem:[#allocation3 + $0x148] sm:$0xff]
    %v1306 = vld [vmem:[#allocation3 + $0x150] sm:$0xff]
    %v1307 = vld [vmem:[#allocation3 + $0x158] sm:$0xff]
    %v1308 = vld [vmem:[#allocation3 + $0x160] sm:$0xff]
    %v1309 = vld [vmem:[#allocation3 + $0x168] sm:$0xff]
    %v1310 = vld [vmem:[#allocation3 + $0x170] sm:$0xff]
    %v1311 = vld [vmem:[#allocation3 + $0x178] sm:$0xff]
    %1312 = vmatpush.msra.mxu0 %v1279
    %1313 = vmatpush.msra.mxu0 %v1278
    %1314 = vmatpush.msra.mxu0 %v1277
    %1315 = vmatpush.msra.mxu0 %v1276
    %1316 = vmatpush.msra.mxu0 %v1275
    %1317 = vmatpush.msra.mxu0 %v1274
    %1318 = vmatpush.msra.mxu0 %v1273
    %1319 = vmatpush.msra.mxu0 %v1272
    %1320 = vmatpush.msra.mxu0 %v1271
    %1321 = vmatpush.msra.mxu0 %v1270
    %1322 = vmatpush.msra.mxu0 %v1269
    %1323 = vmatpush.msra.mxu0 %v1268
    %1324 = vmatpush.msra.mxu0 %v1267
    %1325 = vmatpush.msra.mxu0 %v1266
    %1326 = vmatpush.msra.mxu0 %v1265
    %1327 = vmatpush.msra.mxu0 %v1264
    %1328 = vmatmul.f32.gmra.mxu0 %v1255
    %v1329 = vpop.f32.mrf.mxu0
    %v1330 = vadd.f32 0.0, %v1329
    %1331 = vmatmul.f32.gmra.mxu0 %v1258
    %v1332 = vpop.f32.mrf.mxu0
    %v1333 = vadd.f32 0.0, %v1332
    %1334 = vmatmul.f32.gmra.mxu0 %v1261
    %v1335 = vpop.f32.mrf.mxu0
    %v1336 = vadd.f32 0.0, %v1335
    %1337 = vdwg.mxu0
    %1338 = vmatpush.msra.mxu0 %v1295
    %1339 = vmatpush.msra.mxu0 %v1294
    %1340 = vmatpush.msra.mxu0 %v1293
    %1341 = vmatpush.msra.mxu0 %v1292
    %1342 = vmatpush.msra.mxu0 %v1291
    %1343 = vmatpush.msra.mxu0 %v1290
    %1344 = vmatpush.msra.mxu0 %v1289
    %1345 = vmatpush.msra.mxu0 %v1288
    %1346 = vmatpush.msra.mxu0 %v1287
    %1347 = vmatpush.msra.mxu0 %v1286
    %1348 = vmatpush.msra.mxu0 %v1285
    %1349 = vmatpush.msra.mxu0 %v1284
    %1350 = vmatpush.msra.mxu0 %v1283
    %1351 = vmatpush.msra.mxu0 %v1282
    %1352 = vmatpush.msra.mxu0 %v1281
    %1353 = vmatpush.msra.mxu0 %v1280
    %1354 = vmatmul.f32.gmra.mxu0 %v1256
    %v1355 = vpop.f32.mrf.mxu0
    %v1356 = vadd.f32 %v1330, %v1355
    %1357 = vmatmul.f32.gmra.mxu0 %v1259
    %v1358 = vpop.f32.mrf.mxu0
    %v1359 = vadd.f32 %v1333, %v1358
    %1360 = vmatmul.f32.gmra.mxu0 %v1262
    %v1361 = vpop.f32.mrf.mxu0
    %v1362 = vadd.f32 %v1336, %v1361
    %1363 = vdwg.mxu0
    %1364 = vmatpush.msra.mxu0 %v1311
    %1365 = vmatpush.msra.mxu0 %v1310
    %1366 = vmatpush.msra.mxu0 %v1309
    %1367 = vmatpush.msra.mxu0 %v1308
    %1368 = vmatpush.msra.mxu0 %v1307
    %1369 = vmatpush.msra.mxu0 %v1306
    %1370 = vmatpush.msra.mxu0 %v1305
    %1371 = vmatpush.msra.mxu0 %v1304
    %1372 = vmatpush.msra.mxu0 %v1303
    %1373 = vmatpush.msra.mxu0 %v1302
    %1374 = vmatpush.msra.mxu0 %v1301
    %1375 = vmatpush.msra.mxu0 %v1300
    %1376 = vmatpush.msra.mxu0 %v1299
    %1377 = vmatpush.msra.mxu0 %v1298
    %1378 = vmatpush.msra.mxu0 %v1297
    %1379 = vmatpush.msra.mxu0 %v1296
    %1380 = vmatmul.f32.gmra.mxu0 %v1257
    %v1381 = vpop.f32.mrf.mxu0
    %v1382 = vadd.f32 %v1356, %v1381
    %1383 = vmatmul.f32.gmra.mxu0 %v1260
    %v1384 = vpop.f32.mrf.mxu0
    %v1385 = vadd.f32 %v1359, %v1384
    %1386 = vmatmul.f32.gmra.mxu0 %v1263
    %v1387 = vpop.f32.mrf.mxu0
    %v1388 = vadd.f32 %v1362, %v1387
    %1389 = vdwg.mxu0
    %v1390 = vld [vmem:[#allocation13] sm:$0xff]
    %v1391 = vld [vmem:[#allocation13 + $0x8] sm:$0xff]
    %v1392 = vld [vmem:[#allocation13 + $0x10] sm:$0xff]
    %v1393 = vadd.f32 %v1390, %v1382
    %v1394 = vadd.f32 %v1391, %v1385
    %v1395 = vadd.f32 %v1392, %v1388
    %v1396 = vld [vmem:[%s3] sm:$0x1]
    %v1398 = vperm.slane %v1396, 0
    %v1400 = vadd.f32 %v1393, %v1398
    %v1401 = vadd.f32 %v1394, %v1398
    %v1402 = vadd.f32 %v1395, %v1398
    %vm1403 = vcmp.gt.f32.partialorder %v1400, 0.0
    %vm1404 = vcmp.gt.f32.partialorder %v1401, 0.0
    %vm1405 = vcmp.gt.f32.partialorder %v1402, 0.0
    %v1406 = vmul.f32 %v1400, 0.01
    %v1407 = vmul.f32 %v1401, 0.01
    %v1408 = vmul.f32 %v1402, 0.01
    %v1409 = vsel %vm1403, %v1400, %v1406
    %v1410 = vsel %vm1404, %v1401, %v1407
    %v1411 = vsel %vm1405, %v1402, %v1408
    %1412 = vst [vmem:[#allocation13] sm:$0xff] %v1409
    %1413 = vst [vmem:[#allocation13 + $0x8] sm:$0xff] %v1410
    %1414 = vst [vmem:[#allocation13 + $0x10] sm:$0xff] %v1411
    // Predicated region
    $region26: #{tpu_custom_call.1} parent=1 // pred_check
      _
    $region27: #{tpu_custom_call.1} parent=1 // pred_check_branch
      %1416 = sbr.rel (0) target = $region29
    $region28: #{tpu_custom_call.1} parent=1 // pred_region
      %1418 = vsyncadd [#allocation10], 0
      %s1419 = sshll.u32 [#allocation13], 4
      %s1420 = int_to_ptr.vmem [resolvable:$true] %s1419
      %s1421 = sshll.u32 %s5, 4
      %s1422 = int_to_ptr.hbm [resolvable:$true] %s1421
      %1427 = dma.vmem_to_hbm [thread:$0]  %s1420, 384, %s1422, [#allocation10], 128, 128, 8
    $region29: #{tpu_custom_call.1} parent=1 // pred_fallthru
      _
    // Predicated region
    $region30: #{tpu_custom_call.1} parent=1 // pred_check
      _
    $region31: #{tpu_custom_call.1} parent=1 // pred_check_branch
      %1429 = sbr.rel (0) target = $region33
    $region32: #{tpu_custom_call.1} parent=1 // pred_region
      %1431 = dma.done [#allocation10], 384
    $region33: #{tpu_custom_call.1} parent=1 // pred_fallthru
      _
    %1432 = vsyncpa [#allocation9], 1
    %1433 = vsyncpa [#allocation12], 1
    %1434 = vsyncpa [#allocation10], 1
  %1435 = vsyncmov [#allocation5]
  %s1436 = vpop.sfrf %1435
  %p1437 = scmp.eq.s32.totalorder %s1436, 0
  %p1438 = pneg %p1437
  %1440 = shalt.err (%p1438)

</llo_original>
